<compile_context>
chip_gen: v5e
topology: v5e:2x2
jax: 0.10.0
libtpu: 0.0.40
codegen_flags: <defaults>
</compile_context>

<pallas_src>
import functools

import jax
import jax.numpy as jnp
from jax import lax
from jax.experimental import pallas as pl
from jax.experimental.pallas import tpu as pltpu


def mha_kernel(x_ref, k_ref, v_ref, wq_ref, bq_ref, wp_ref, bp_ref,
               out_ref, attn_ref, *, num_heads, head_dim, scale):
    # ---- Q projection for this (batch, query-tile) block; scale folded in ----
    x = x_ref[0]                                                    # (tq, C) bf16
    q = jnp.dot(x, wq_ref[...], preferred_element_type=jnp.float32) + bq_ref[...]
    q = (q * scale).astype(jnp.bfloat16)                            # (tq, C)

    k = k_ref[0]                                                    # (M, C) bf16
    v = v_ref[0]                                                    # (M, C) bf16

    # ---- Per-head attention: bounds live softmax intermediates to (tq, M) ----
    head_outs = []
    for h in range(num_heads):                                      # static unroll
        sl = slice(h * head_dim, (h + 1) * head_dim)
        q_h = q[:, sl]                                              # (tq, hd) bf16
        k_h = k[:, sl]                                              # (M,  hd) bf16
        v_h = v[:, sl]                                              # (M,  hd) bf16

        # scores: contract the head dim of q_h and k_h -> (tq, M) f32
        s = lax.dot_general(q_h, k_h, (((1,), (1,)), ((), ())),
                            preferred_element_type=jnp.float32)
        s_max = jnp.max(s, axis=-1, keepdims=True)
        p = jnp.exp(s - s_max)
        denom = jnp.sum(p, axis=-1, keepdims=True)
        inv = 1.0 / denom                         # exact reciprocal, only tq elements
        p = p * inv                               # rows sum to 1 (f32 exact)

        attn_ref[0, h] = p.astype(attn_ref.dtype)                   # lane-dense (tq, M)

        o_h = jnp.dot(p.astype(v_h.dtype), v_h,
                      preferred_element_type=jnp.float32)           # (tq, hd) f32
        head_outs.append(o_h.astype(jnp.bfloat16))

    # ---- Merge heads (value-level concat, no scratch) + output projection ----
    o = jnp.concatenate(head_outs, axis=-1)                         # (tq, C) bf16
    out_ref[0] = (jnp.dot(o, wp_ref[...], preferred_element_type=jnp.float32)
                  + bp_ref[...]).astype(out_ref.dtype)


def _weight_spec(shape, buffered):
    """BlockSpec for a grid-invariant operand (single-buffered when supported)."""
    zeros = (0,) * len(shape)
    idx = lambda bi, qi: zeros
    if buffered:
        return pl.BlockSpec(shape, idx, pipeline_mode=pl.Buffered(1))
    return pl.BlockSpec(shape, idx)


def _pick_tq(n, device_kind):
    """Query-tile size + padded N.  256 on v6e (2x256 MXU, 128 MiB VMEM), else 128."""
    pref = 256 if "v6" in device_kind else 128
    if n <= pref:
        return n, n                    # single full-extent tile (always legal)
    for t in (pref, 128):
        if n % t == 0:
            return t, n
    t = 128                            # ragged N: pad up, slice outputs afterwards
    return t, ((n + t - 1) // t) * t


def multi_head_attention(x, y, params, num_heads, attn_layout="bnmh",
                         attn_dtype=jnp.bfloat16, buffered_weights=True):
    if y is None:
        y = x
    b, n, c = x.shape
    _, m, d = y.shape
    assert c % num_heads == 0
    hd = c // num_heads
    scale = float(hd) ** (-0.5)

    kind = jax.devices()[0].device_kind.lower()
    tq, n_pad = _pick_tq(n, kind)
    # Leave headroom on v7x (64 MiB physical per TC); allow more on v5e/v6e (128 MiB).
    vmem_limit = (48 if "v7" in kind else 96) * 1024 * 1024

    bf16, f32 = jnp.bfloat16, jnp.float32
    # PyTorch nn.Linear stores W as (out, in); pre-transpose, split kv halves.
    wq_t = params["wq"].T.astype(bf16)            # (C, C)
    wk_t = params["wkv"][:c].T.astype(bf16)       # (D, C)
    wv_t = params["wkv"][c:].T.astype(bf16)       # (D, C)
    wp_t = params["wp"].T.astype(bf16)            # (C, C)
    bq = params["bq"].reshape(1, c).astype(f32)
    bk = params["bkv"][:c].astype(f32)
    bv = params["bkv"][c:].astype(f32)
    bp = params["bp"].reshape(1, c).astype(f32)

    # ---- Hoisted K/V projections: plain XLA GEMMs, pipelined into the kernel ----
    yb = y.astype(bf16)
    k = (jnp.dot(yb, wk_t, preferred_element_type=f32) + bk).astype(bf16)  # (B, M, C)
    v = (jnp.dot(yb, wv_t, preferred_element_type=f32) + bv).astype(bf16)  # (B, M, C)

    xb = x.astype(bf16)
    if n_pad != n:
        xb = jnp.pad(xb, ((0, 0), (0, n_pad - n), (0, 0)))

    kernel = functools.partial(mha_kernel, num_heads=num_heads,
                               head_dim=hd, scale=scale)

    out, attn_bhnm = pl.pallas_call(
        kernel,
        out_shape=(
            jax.ShapeDtypeStruct((b, n_pad, c), jnp.float32),
            jax.ShapeDtypeStruct((b, num_heads, n_pad, m), attn_dtype),
        ),
        grid=(b, n_pad // tq),
        in_specs=[
            pl.BlockSpec((1, tq, c), lambda bi, qi: (bi, qi, 0)),   # x tile
            pl.BlockSpec((1, m, c), lambda bi, qi: (bi, 0, 0)),     # K (per batch)
            pl.BlockSpec((1, m, c), lambda bi, qi: (bi, 0, 0)),     # V (per batch)
            _weight_spec((c, c), buffered_weights),                 # Wq^T
            _weight_spec((1, c), buffered_weights),                 # bq
            _weight_spec((c, c), buffered_weights),                 # Wp^T
            _weight_spec((1, c), buffered_weights),                 # bp
        ],
        out_specs=(
            pl.BlockSpec((1, tq, c), lambda bi, qi: (bi, qi, 0)),
            pl.BlockSpec((1, num_heads, tq, m), lambda bi, qi: (bi, 0, qi, 0)),
        ),
        compiler_params=pltpu.CompilerParams(
            dimension_semantics=("parallel", "parallel"),
            vmem_limit_bytes=vmem_limit,
        ),
    )(xb, k, v, wq_t, bq, wp_t, bp)

    if n_pad != n:
        out = out[:, :n]
        attn_bhnm = attn_bhnm[:, :, :n]

    if attn_layout == "bhnm":
        return out, attn_bhnm                 # perf layout: skip the HBM re-permute
    # PyTorch einsum layout 'bnhd,bmhd->bnmh'  ->  (B, N, M, H).
    return out, jnp.transpose(attn_bhnm, (0, 2, 3, 1))


def mha_reference(x, y, params, num_heads):
    """Pure-JAX f32 reference mirroring the PyTorch forward."""
    b, n, c = x.shape
    _, m, d = y.shape
    hd = c // num_heads
    scale = float(hd) ** (-0.5)
    q = (x @ params["wq"].T + params["bq"]).reshape(b, n, num_heads, hd)
    kv = (y @ params["wkv"].T + params["bkv"]).reshape(b, m, 2, num_heads, hd)
    k, v = kv[:, :, 0], kv[:, :, 1]
    attn = jnp.einsum("bnhd,bmhd->bnmh", q, k) * scale
    attn = jax.nn.softmax(attn, axis=2)
    out = jnp.einsum("bnmh,bmhd->bnhd", attn, v).reshape(b, n, c)
    out = out @ params["wp"].T + params["bp"]
    return out, attn


def init_params(key, dim_self, dim_ref):
    """Deterministic init mimicking nn.Linear defaults (uniform ±1/sqrt(fan_in))."""
    k1, k2, k3, k4, k5, k6 = jax.random.split(key, 6)
    bq_bound = 1.0 / (dim_self ** 0.5)
    bkv_bound = 1.0 / (dim_ref ** 0.5)
    return {
        "wq": jax.random.uniform(k1, (dim_self, dim_self), jnp.float32,
                                 -bq_bound, bq_bound),
        "bq": jax.random.uniform(k2, (dim_self,), jnp.float32, -bq_bound, bq_bound),
        "wkv": jax.random.uniform(k3, (2 * dim_self, dim_ref), jnp.float32,
                                  -bkv_bound, bkv_bound),
        "bkv": jax.random.uniform(k4, (2 * dim_self,), jnp.float32,
                                  -bkv_bound, bkv_bound),
        "wp": jax.random.uniform(k5, (dim_self, dim_self), jnp.float32,
                                 -bq_bound, bq_bound),
        "bp": jax.random.uniform(k6, (dim_self,), jnp.float32, -bq_bound, bq_bound),
    }


if __name__ == "__main__":
    B, N, C = 2, 8, 32          # batch, query seq, dim_self
    M, D = 16, 64               # kv seq, dim_ref (cross-attention path exercised)
    NUM_HEADS = 4

    root = jax.random.PRNGKey(0)
    kx, ky, kp = jax.random.split(root, 3)
    x = jax.random.normal(kx, (B, N, C), dtype=jnp.float32)
    y = jax.random.normal(ky, (B, M, D), dtype=jnp.float32)

    params = init_params(kp, dim_self=C, dim_ref=D)

    mha = jax.jit(multi_head_attention,
                  static_argnames=("num_heads", "attn_layout", "attn_dtype",
                                   "buffered_weights"))
    try:
        out, attn = mha(x, y, params, num_heads=NUM_HEADS)
        out = jax.block_until_ready(out)
    except Exception:
        # Fallback if this JAX build rejects pipeline_mode=pl.Buffered(1).
        out, attn = mha(x, y, params, num_heads=NUM_HEADS, buffered_weights=False)
        out = jax.block_until_ready(out)
    attn = jax.block_until_ready(attn)

    ref_out, ref_attn = mha_reference(x, y, params, NUM_HEADS)
    assert out.shape == (B, N, C) and attn.shape == (B, N, M, NUM_HEADS)
    # bf16 MXU inputs (and bf16 attention writeback) -> compare against the f32
    # reference with correspondingly relaxed tolerances.
    assert jnp.allclose(out, ref_out, atol=2e-2, rtol=2e-2)
    assert jnp.allclose(jnp.asarray(attn, jnp.float32), ref_attn,
                        atol=2e-2, rtol=5e-2)

    print("KERNEL_OK")
</pallas_src>

<mosaic_0001>
module attributes {stable_mosaic.version = 11 : i64} {
  func.func @mha_kernel(%arg0: i32, %arg1: i32, %arg2: memref<1x8x32xbf16, #tpu.memory_space<vmem>>, %arg3: memref<1x16x32xbf16, #tpu.memory_space<vmem>>, %arg4: memref<1x16x32xbf16, #tpu.memory_space<vmem>>, %arg5: memref<32x32xbf16, #tpu.memory_space<vmem>>, %arg6: memref<1x32xf32, #tpu.memory_space<vmem>>, %arg7: memref<32x32xbf16, #tpu.memory_space<vmem>>, %arg8: memref<1x32xf32, #tpu.memory_space<vmem>>, %arg9: memref<1x8x32xf32, #tpu.memory_space<vmem>>, %arg10: memref<1x4x8x16xbf16, #tpu.memory_space<vmem>>) attributes {dimension_semantics = [#tpu.dimension_semantics<parallel>, #tpu.dimension_semantics<parallel>], iteration_bounds = array<i64: 2, 1>, scalar_prefetch = 0 : i64, scratch_operands = 0 : i64, tpu.core_type = #tpu.core_type<tc>, window_params = [{transform_indices = @transform_0, window_bounds = array<i64: 1, 8, 32>}, {transform_indices = @transform_1, window_bounds = array<i64: 1, 16, 32>}, {transform_indices = @transform_2, window_bounds = array<i64: 1, 16, 32>}, {pipeline_mode = #tpu.pipeline_mode<synchronous>, transform_indices = @transform_3, window_bounds = array<i64: 32, 32>}, {pipeline_mode = #tpu.pipeline_mode<synchronous>, transform_indices = @transform_4, window_bounds = array<i64: 1, 32>}, {pipeline_mode = #tpu.pipeline_mode<synchronous>, transform_indices = @transform_5, window_bounds = array<i64: 32, 32>}, {pipeline_mode = #tpu.pipeline_mode<synchronous>, transform_indices = @transform_6, window_bounds = array<i64: 1, 32>}, {transform_indices = @transform_7, window_bounds = array<i64: 1, 8, 32>}, {transform_indices = @transform_8, window_bounds = array<i64: 1, 4, 8, 16>}]} {
    %c0 = arith.constant 0 : index
    %c0_0 = arith.constant 0 : index
    %c0_1 = arith.constant 0 : index
    %0 = vector.load %arg2[%c0, %c0_0, %c0_1] : memref<1x8x32xbf16, #tpu.memory_space<vmem>>, vector<1x8x32xbf16>
    %1 = vector.shape_cast %0 : vector<1x8x32xbf16> to vector<8x32xbf16>
    %c0_2 = arith.constant 0 : index
    %c0_3 = arith.constant 0 : index
    %2 = vector.load %arg5[%c0_2, %c0_3] : memref<32x32xbf16, #tpu.memory_space<vmem>>, vector<32x32xbf16>
    %cst = arith.constant dense<0.000000e+00> : vector<8x32xf32>
    %3 = tpu.matmul %1, %2, %cst {dimension_numbers = #tpu.dot_dimension_numbers<[1], [0], [0], [1], [0, 0, 1, 1], [], []>} : vector<8x32xbf16>, vector<32x32xbf16>, vector<8x32xf32> -> vector<8x32xf32>
    %c0_4 = arith.constant 0 : index
    %c0_5 = arith.constant 0 : index
    %4 = vector.load %arg6[%c0_4, %c0_5] : memref<1x32xf32, #tpu.memory_space<vmem>>, vector<1x32xf32>
    %5 = vector.broadcast %4 : vector<1x32xf32> to vector<8x32xf32>
    %6 = arith.addf %3, %5 : vector<8x32xf32>
    %cst_6 = arith.constant 0.353553385 : f32
    %7 = vector.broadcast %cst_6 : f32 to vector<8x32xf32>
    %8 = arith.mulf %6, %7 : vector<8x32xf32>
    %9 = arith.truncf %8 : vector<8x32xf32> to vector<8x32xbf16>
    %c0_7 = arith.constant 0 : index
    %c0_8 = arith.constant 0 : index
    %c0_9 = arith.constant 0 : index
    %10 = vector.load %arg3[%c0_7, %c0_8, %c0_9] : memref<1x16x32xbf16, #tpu.memory_space<vmem>>, vector<1x16x32xbf16>
    %11 = vector.shape_cast %10 : vector<1x16x32xbf16> to vector<16x32xbf16>
    %c0_10 = arith.constant 0 : index
    %c0_11 = arith.constant 0 : index
    %c0_12 = arith.constant 0 : index
    %12 = vector.load %arg4[%c0_10, %c0_11, %c0_12] : memref<1x16x32xbf16, #tpu.memory_space<vmem>>, vector<1x16x32xbf16>
    %13 = vector.shape_cast %12 : vector<1x16x32xbf16> to vector<16x32xbf16>
    %14 = vector.extract_strided_slice %9 {offsets = [0, 0], sizes = [8, 8], strides = [1, 1]} : vector<8x32xbf16> to vector<8x8xbf16>
    %15 = vector.extract_strided_slice %11 {offsets = [0, 0], sizes = [16, 8], strides = [1, 1]} : vector<16x32xbf16> to vector<16x8xbf16>
    %16 = vector.extract_strided_slice %13 {offsets = [0, 0], sizes = [16, 8], strides = [1, 1]} : vector<16x32xbf16> to vector<16x8xbf16>
    %cst_13 = arith.constant dense<0.000000e+00> : vector<8x16xf32>
    %17 = tpu.matmul %14, %15, %cst_13 {dimension_numbers = #tpu.dot_dimension_numbers<[1], [1], [0], [0], [0, 0, 1, 0], [], []>} : vector<8x8xbf16>, vector<16x8xbf16>, vector<8x16xf32> -> vector<8x16xf32>
    %cst_14 = arith.constant dense<0xFF800000> : vector<8xf32>
    %18 = vector.multi_reduction <maximumf>, %17, %cst_14 [1] : vector<8x16xf32> to vector<8xf32>
    %19 = vector.shape_cast %18 : vector<8xf32> to vector<8x1xf32>
    %20 = vector.broadcast %19 : vector<8x1xf32> to vector<8x16xf32>
    %21 = arith.subf %17, %20 : vector<8x16xf32>
    %22 = math.exp %21 : vector<8x16xf32>
    %cst_15 = arith.constant dense<0.000000e+00> : vector<8xf32>
    %23 = vector.multi_reduction <add>, %22, %cst_15 [1] : vector<8x16xf32> to vector<8xf32>
    %24 = vector.shape_cast %23 : vector<8xf32> to vector<8x1xf32>
    %cst_16 = arith.constant 1.000000e+00 : f32
    %25 = vector.broadcast %cst_16 : f32 to vector<8x1xf32>
    %26 = arith.divf %25, %24 : vector<8x1xf32>
    %27 = vector.broadcast %26 : vector<8x1xf32> to vector<8x16xf32>
    %28 = arith.mulf %22, %27 : vector<8x16xf32>
    %29 = arith.truncf %28 : vector<8x16xf32> to vector<8x16xbf16>
    %c0_17 = arith.constant 0 : index
    %c0_18 = arith.constant 0 : index
    %c0_19 = arith.constant 0 : index
    %c0_20 = arith.constant 0 : index
    %30 = vector.load %arg10[%c0_17, %c0_18, %c0_19, %c0_20] : memref<1x4x8x16xbf16, #tpu.memory_space<vmem>>, vector<1x1x8x16xbf16>
    %31 = vector.shape_cast %30 : vector<1x1x8x16xbf16> to vector<8x16xbf16>
    %32 = vector.shape_cast %29 : vector<8x16xbf16> to vector<1x1x8x16xbf16>
    tpu.vector_store %arg10[%c0_17, %c0_18, %c0_19, %c0_20], %32 {strides = array<i32>} : memref<1x4x8x16xbf16, #tpu.memory_space<vmem>>, vector<1x1x8x16xbf16>,
    %33 = arith.truncf %28 : vector<8x16xf32> to vector<8x16xbf16>
    %cst_21 = arith.constant dense<0.000000e+00> : vector<8x8xf32>
    %34 = tpu.matmul %33, %16, %cst_21 {dimension_numbers = #tpu.dot_dimension_numbers<[1], [0], [0], [1], [0, 0, 1, 1], [], []>} : vector<8x16xbf16>, vector<16x8xbf16>, vector<8x8xf32> -> vector<8x8xf32>
    %35 = arith.truncf %34 : vector<8x8xf32> to vector<8x8xbf16>
    %36 = vector.extract_strided_slice %9 {offsets = [0, 8], sizes = [8, 8], strides = [1, 1]} : vector<8x32xbf16> to vector<8x8xbf16>
    %37 = vector.extract_strided_slice %11 {offsets = [0, 8], sizes = [16, 8], strides = [1, 1]} : vector<16x32xbf16> to vector<16x8xbf16>
    %38 = vector.extract_strided_slice %13 {offsets = [0, 8], sizes = [16, 8], strides = [1, 1]} : vector<16x32xbf16> to vector<16x8xbf16>
    %cst_22 = arith.constant dense<0.000000e+00> : vector<8x16xf32>
    %39 = tpu.matmul %36, %37, %cst_22 {dimension_numbers = #tpu.dot_dimension_numbers<[1], [1], [0], [0], [0, 0, 1, 0], [], []>} : vector<8x8xbf16>, vector<16x8xbf16>, vector<8x16xf32> -> vector<8x16xf32>
    %cst_23 = arith.constant dense<0xFF800000> : vector<8xf32>
    %40 = vector.multi_reduction <maximumf>, %39, %cst_23 [1] : vector<8x16xf32> to vector<8xf32>
    %41 = vector.shape_cast %40 : vector<8xf32> to vector<8x1xf32>
    %42 = vector.broadcast %41 : vector<8x1xf32> to vector<8x16xf32>
    %43 = arith.subf %39, %42 : vector<8x16xf32>
    %44 = math.exp %43 : vector<8x16xf32>
    %cst_24 = arith.constant dense<0.000000e+00> : vector<8xf32>
    %45 = vector.multi_reduction <add>, %44, %cst_24 [1] : vector<8x16xf32> to vector<8xf32>
    %46 = vector.shape_cast %45 : vector<8xf32> to vector<8x1xf32>
    %cst_25 = arith.constant 1.000000e+00 : f32
    %47 = vector.broadcast %cst_25 : f32 to vector<8x1xf32>
    %48 = arith.divf %47, %46 : vector<8x1xf32>
    %49 = vector.broadcast %48 : vector<8x1xf32> to vector<8x16xf32>
    %50 = arith.mulf %44, %49 : vector<8x16xf32>
    %51 = arith.truncf %50 : vector<8x16xf32> to vector<8x16xbf16>
    %c0_26 = arith.constant 0 : index
    %c1 = arith.constant 1 : index
    %c0_27 = arith.constant 0 : index
    %c0_28 = arith.constant 0 : index
    %52 = vector.load %arg10[%c0_26, %c1, %c0_27, %c0_28] : memref<1x4x8x16xbf16, #tpu.memory_space<vmem>>, vector<1x1x8x16xbf16>
    %53 = vector.shape_cast %52 : vector<1x1x8x16xbf16> to vector<8x16xbf16>
    %54 = vector.shape_cast %51 : vector<8x16xbf16> to vector<1x1x8x16xbf16>
    tpu.vector_store %arg10[%c0_26, %c1, %c0_27, %c0_28], %54 {strides = array<i32>} : memref<1x4x8x16xbf16, #tpu.memory_space<vmem>>, vector<1x1x8x16xbf16>,
    %55 = arith.truncf %50 : vector<8x16xf32> to vector<8x16xbf16>
    %cst_29 = arith.constant dense<0.000000e+00> : vector<8x8xf32>
    %56 = tpu.matmul %55, %38, %cst_29 {dimension_numbers = #tpu.dot_dimension_numbers<[1], [0], [0], [1], [0, 0, 1, 1], [], []>} : vector<8x16xbf16>, vector<16x8xbf16>, vector<8x8xf32> -> vector<8x8xf32>
    %57 = arith.truncf %56 : vector<8x8xf32> to vector<8x8xbf16>
    %58 = vector.extract_strided_slice %9 {offsets = [0, 16], sizes = [8, 8], strides = [1, 1]} : vector<8x32xbf16> to vector<8x8xbf16>
    %59 = vector.extract_strided_slice %11 {offsets = [0, 16], sizes = [16, 8], strides = [1, 1]} : vector<16x32xbf16> to vector<16x8xbf16>
    %60 = vector.extract_strided_slice %13 {offsets = [0, 16], sizes = [16, 8], strides = [1, 1]} : vector<16x32xbf16> to vector<16x8xbf16>
    %cst_30 = arith.constant dense<0.000000e+00> : vector<8x16xf32>
    %61 = tpu.matmul %58, %59, %cst_30 {dimension_numbers = #tpu.dot_dimension_numbers<[1], [1], [0], [0], [0, 0, 1, 0], [], []>} : vector<8x8xbf16>, vector<16x8xbf16>, vector<8x16xf32> -> vector<8x16xf32>
    %cst_31 = arith.constant dense<0xFF800000> : vector<8xf32>
    %62 = vector.multi_reduction <maximumf>, %61, %cst_31 [1] : vector<8x16xf32> to vector<8xf32>
    %63 = vector.shape_cast %62 : vector<8xf32> to vector<8x1xf32>
    %64 = vector.broadcast %63 : vector<8x1xf32> to vector<8x16xf32>
    %65 = arith.subf %61, %64 : vector<8x16xf32>
    %66 = math.exp %65 : vector<8x16xf32>
    %cst_32 = arith.constant dense<0.000000e+00> : vector<8xf32>
    %67 = vector.multi_reduction <add>, %66, %cst_32 [1] : vector<8x16xf32> to vector<8xf32>
    %68 = vector.shape_cast %67 : vector<8xf32> to vector<8x1xf32>
    %cst_33 = arith.constant 1.000000e+00 : f32
    %69 = vector.broadcast %cst_33 : f32 to vector<8x1xf32>
    %70 = arith.divf %69, %68 : vector<8x1xf32>
    %71 = vector.broadcast %70 : vector<8x1xf32> to vector<8x16xf32>
    %72 = arith.mulf %66, %71 : vector<8x16xf32>
    %73 = arith.truncf %72 : vector<8x16xf32> to vector<8x16xbf16>
    %c0_34 = arith.constant 0 : index
    %c2 = arith.constant 2 : index
    %c0_35 = arith.constant 0 : index
    %c0_36 = arith.constant 0 : index
    %74 = vector.load %arg10[%c0_34, %c2, %c0_35, %c0_36] : memref<1x4x8x16xbf16, #tpu.memory_space<vmem>>, vector<1x1x8x16xbf16>
    %75 = vector.shape_cast %74 : vector<1x1x8x16xbf16> to vector<8x16xbf16>
    %76 = vector.shape_cast %73 : vector<8x16xbf16> to vector<1x1x8x16xbf16>
    tpu.vector_store %arg10[%c0_34, %c2, %c0_35, %c0_36], %76 {strides = array<i32>} : memref<1x4x8x16xbf16, #tpu.memory_space<vmem>>, vector<1x1x8x16xbf16>,
    %77 = arith.truncf %72 : vector<8x16xf32> to vector<8x16xbf16>
    %cst_37 = arith.constant dense<0.000000e+00> : vector<8x8xf32>
    %78 = tpu.matmul %77, %60, %cst_37 {dimension_numbers = #tpu.dot_dimension_numbers<[1], [0], [0], [1], [0, 0, 1, 1], [], []>} : vector<8x16xbf16>, vector<16x8xbf16>, vector<8x8xf32> -> vector<8x8xf32>
    %79 = arith.truncf %78 : vector<8x8xf32> to vector<8x8xbf16>
    %80 = vector.extract_strided_slice %9 {offsets = [0, 24], sizes = [8, 8], strides = [1, 1]} : vector<8x32xbf16> to vector<8x8xbf16>
    %81 = vector.extract_strided_slice %11 {offsets = [0, 24], sizes = [16, 8], strides = [1, 1]} : vector<16x32xbf16> to vector<16x8xbf16>
    %82 = vector.extract_strided_slice %13 {offsets = [0, 24], sizes = [16, 8], strides = [1, 1]} : vector<16x32xbf16> to vector<16x8xbf16>
    %cst_38 = arith.constant dense<0.000000e+00> : vector<8x16xf32>
    %83 = tpu.matmul %80, %81, %cst_38 {dimension_numbers = #tpu.dot_dimension_numbers<[1], [1], [0], [0], [0, 0, 1, 0], [], []>} : vector<8x8xbf16>, vector<16x8xbf16>, vector<8x16xf32> -> vector<8x16xf32>
    %cst_39 = arith.constant dense<0xFF800000> : vector<8xf32>
    %84 = vector.multi_reduction <maximumf>, %83, %cst_39 [1] : vector<8x16xf32> to vector<8xf32>
    %85 = vector.shape_cast %84 : vector<8xf32> to vector<8x1xf32>
    %86 = vector.broadcast %85 : vector<8x1xf32> to vector<8x16xf32>
    %87 = arith.subf %83, %86 : vector<8x16xf32>
    %88 = math.exp %87 : vector<8x16xf32>
    %cst_40 = arith.constant dense<0.000000e+00> : vector<8xf32>
    %89 = vector.multi_reduction <add>, %88, %cst_40 [1] : vector<8x16xf32> to vector<8xf32>
    %90 = vector.shape_cast %89 : vector<8xf32> to vector<8x1xf32>
    %cst_41 = arith.constant 1.000000e+00 : f32
    %91 = vector.broadcast %cst_41 : f32 to vector<8x1xf32>
    %92 = arith.divf %91, %90 : vector<8x1xf32>
    %93 = vector.broadcast %92 : vector<8x1xf32> to vector<8x16xf32>
    %94 = arith.mulf %88, %93 : vector<8x16xf32>
    %95 = arith.truncf %94 : vector<8x16xf32> to vector<8x16xbf16>
    %c0_42 = arith.constant 0 : index
    %c3 = arith.constant 3 : index
    %c0_43 = arith.constant 0 : index
    %c0_44 = arith.constant 0 : index
    %96 = vector.load %arg10[%c0_42, %c3, %c0_43, %c0_44] : memref<1x4x8x16xbf16, #tpu.memory_space<vmem>>, vector<1x1x8x16xbf16>
    %97 = vector.shape_cast %96 : vector<1x1x8x16xbf16> to vector<8x16xbf16>
    %98 = vector.shape_cast %95 : vector<8x16xbf16> to vector<1x1x8x16xbf16>
    tpu.vector_store %arg10[%c0_42, %c3, %c0_43, %c0_44], %98 {strides = array<i32>} : memref<1x4x8x16xbf16, #tpu.memory_space<vmem>>, vector<1x1x8x16xbf16>,
    %99 = arith.truncf %94 : vector<8x16xf32> to vector<8x16xbf16>
    %cst_45 = arith.constant dense<0.000000e+00> : vector<8x8xf32>
    %100 = tpu.matmul %99, %82, %cst_45 {dimension_numbers = #tpu.dot_dimension_numbers<[1], [0], [0], [1], [0, 0, 1, 1], [], []>} : vector<8x16xbf16>, vector<16x8xbf16>, vector<8x8xf32> -> vector<8x8xf32>
    %101 = arith.truncf %100 : vector<8x8xf32> to vector<8x8xbf16>
    %102 = tpu.concatenate %35, %57, %79, %101 in 1 : vector<8x8xbf16>, vector<8x8xbf16>, vector<8x8xbf16>, vector<8x8xbf16> -> vector<8x32xbf16>
    %c0_46 = arith.constant 0 : index
    %c0_47 = arith.constant 0 : index
    %103 = vector.load %arg7[%c0_46, %c0_47] : memref<32x32xbf16, #tpu.memory_space<vmem>>, vector<32x32xbf16>
    %cst_48 = arith.constant dense<0.000000e+00> : vector<8x32xf32>
    %104 = tpu.matmul %102, %103, %cst_48 {dimension_numbers = #tpu.dot_dimension_numbers<[1], [0], [0], [1], [0, 0, 1, 1], [], []>} : vector<8x32xbf16>, vector<32x32xbf16>, vector<8x32xf32> -> vector<8x32xf32>
    %c0_49 = arith.constant 0 : index
    %c0_50 = arith.constant 0 : index
    %105 = vector.load %arg8[%c0_49, %c0_50] : memref<1x32xf32, #tpu.memory_space<vmem>>, vector<1x32xf32>
    %106 = vector.broadcast %105 : vector<1x32xf32> to vector<8x32xf32>
    %107 = arith.addf %104, %106 : vector<8x32xf32>
    %c0_51 = arith.constant 0 : index
    %c0_52 = arith.constant 0 : index
    %c0_53 = arith.constant 0 : index
    %108 = vector.load %arg9[%c0_51, %c0_52, %c0_53] : memref<1x8x32xf32, #tpu.memory_space<vmem>>, vector<1x8x32xf32>
    %109 = vector.shape_cast %108 : vector<1x8x32xf32> to vector<8x32xf32>
    %110 = vector.shape_cast %107 : vector<8x32xf32> to vector<1x8x32xf32>
    tpu.vector_store %arg9[%c0_51, %c0_52, %c0_53], %110 {strides = array<i32>} : memref<1x8x32xf32, #tpu.memory_space<vmem>>, vector<1x8x32xf32>,
    return
  }
  func.func @transform_0(%arg0: i32, %arg1: i32) -> (i32, i32, i32) {
    %c0_i32 = arith.constant 0 : i32
    %c0_i32_0 = arith.constant 0 : i32
    return %arg0, %arg1, %c0_i32 : i32, i32, i32
  }
  func.func @transform_1(%arg0: i32, %arg1: i32) -> (i32, i32, i32) {
    %c0_i32 = arith.constant 0 : i32
    %c0_i32_0 = arith.constant 0 : i32
    %c0_i32_1 = arith.constant 0 : i32
    return %arg0, %c0_i32, %c0_i32_0 : i32, i32, i32
  }
  func.func @transform_2(%arg0: i32, %arg1: i32) -> (i32, i32, i32) {
    %c0_i32 = arith.constant 0 : i32
    %c0_i32_0 = arith.constant 0 : i32
    %c0_i32_1 = arith.constant 0 : i32
    return %arg0, %c0_i32, %c0_i32_0 : i32, i32, i32
  }
  func.func @transform_3(%arg0: i32, %arg1: i32) -> (i32, i32) {
    %c0_i32 = arith.constant 0 : i32
    %c0_i32_0 = arith.constant 0 : i32
    %c0_i32_1 = arith.constant 0 : i32
    return %c0_i32, %c0_i32_0 : i32, i32
  }
  func.func @transform_4(%arg0: i32, %arg1: i32) -> (i32, i32) {
    %c0_i32 = arith.constant 0 : i32
    %c0_i32_0 = arith.constant 0 : i32
    %c0_i32_1 = arith.constant 0 : i32
    return %c0_i32, %c0_i32_0 : i32, i32
  }
  func.func @transform_5(%arg0: i32, %arg1: i32) -> (i32, i32) {
    %c0_i32 = arith.constant 0 : i32
    %c0_i32_0 = arith.constant 0 : i32
    %c0_i32_1 = arith.constant 0 : i32
    return %c0_i32, %c0_i32_0 : i32, i32
  }
  func.func @transform_6(%arg0: i32, %arg1: i32) -> (i32, i32) {
    %c0_i32 = arith.constant 0 : i32
    %c0_i32_0 = arith.constant 0 : i32
    %c0_i32_1 = arith.constant 0 : i32
    return %c0_i32, %c0_i32_0 : i32, i32
  }
  func.func @transform_7(%arg0: i32, %arg1: i32) -> (i32, i32, i32) {
    %c0_i32 = arith.constant 0 : i32
    %c0_i32_0 = arith.constant 0 : i32
    return %arg0, %arg1, %c0_i32 : i32, i32, i32
  }
  func.func @transform_8(%arg0: i32, %arg1: i32) -> (i32, i32, i32, i32) {
    %c0_i32 = arith.constant 0 : i32
    %c0_i32_0 = arith.constant 0 : i32
    %c0_i32_1 = arith.constant 0 : i32
    return %arg0, %c0_i32, %arg1, %c0_i32_0 : i32, i32, i32, i32
  }
}

module attributes {stable_mosaic.version = 11 : i64} {
  func.func @mha_kernel(%arg0: i32, %arg1: i32, %arg2: memref<1x8x32xbf16, #tpu.memory_space<vmem>>, %arg3: memref<1x16x32xbf16, #tpu.memory_space<vmem>>, %arg4: memref<1x16x32xbf16, #tpu.memory_space<vmem>>, %arg5: memref<32x32xbf16, #tpu.memory_space<vmem>>, %arg6: memref<1x32xf32, #tpu.memory_space<vmem>>, %arg7: memref<32x32xbf16, #tpu.memory_space<vmem>>, %arg8: memref<1x32xf32, #tpu.memory_space<vmem>>, %arg9: memref<1x8x32xf32, #tpu.memory_space<vmem>>, %arg10: memref<1x4x8x16xbf16, #tpu.memory_space<vmem>>) attributes {dimension_semantics = [#tpu.dimension_semantics<parallel>, #tpu.dimension_semantics<parallel>], iteration_bounds = array<i64: 2, 1>, scalar_prefetch = 0 : i64, scratch_operands = 0 : i64, tpu.core_type = #tpu.core_type<tc>, window_params = [{transform_indices = @transform_0, window_bounds = array<i64: 1, 8, 32>}, {transform_indices = @transform_1, window_bounds = array<i64: 1, 16, 32>}, {transform_indices = @transform_2, window_bounds = array<i64: 1, 16, 32>}, {pipeline_mode = #tpu.pipeline_mode<synchronous>, transform_indices = @transform_3, window_bounds = array<i64: 32, 32>}, {pipeline_mode = #tpu.pipeline_mode<synchronous>, transform_indices = @transform_4, window_bounds = array<i64: 1, 32>}, {pipeline_mode = #tpu.pipeline_mode<synchronous>, transform_indices = @transform_5, window_bounds = array<i64: 32, 32>}, {pipeline_mode = #tpu.pipeline_mode<synchronous>, transform_indices = @transform_6, window_bounds = array<i64: 1, 32>}, {transform_indices = @transform_7, window_bounds = array<i64: 1, 8, 32>}, {transform_indices = @transform_8, window_bounds = array<i64: 1, 4, 8, 16>}]} {
    %c0 = arith.constant 0 : index
    %c0_0 = arith.constant 0 : index
    %c0_1 = arith.constant 0 : index
    %0 = vector.load %arg2[%c0, %c0_0, %c0_1] : memref<1x8x32xbf16, #tpu.memory_space<vmem>>, vector<1x8x32xbf16>
    %1 = vector.shape_cast %0 : vector<1x8x32xbf16> to vector<8x32xbf16>
    %c0_2 = arith.constant 0 : index
    %c0_3 = arith.constant 0 : index
    %2 = vector.load %arg5[%c0_2, %c0_3] : memref<32x32xbf16, #tpu.memory_space<vmem>>, vector<32x32xbf16>
    %cst = arith.constant dense<0.000000e+00> : vector<8x32xf32>
    %3 = tpu.matmul %1, %2, %cst {dimension_numbers = #tpu.dot_dimension_numbers<[1], [0], [0], [1], [0, 0, 1, 1], [], []>} : vector<8x32xbf16>, vector<32x32xbf16>, vector<8x32xf32> -> vector<8x32xf32>
    %c0_4 = arith.constant 0 : index
    %c0_5 = arith.constant 0 : index
    %4 = vector.load %arg6[%c0_4, %c0_5] : memref<1x32xf32, #tpu.memory_space<vmem>>, vector<1x32xf32>
    %5 = vector.broadcast %4 : vector<1x32xf32> to vector<8x32xf32>
    %6 = arith.addf %3, %5 : vector<8x32xf32>
    %cst_6 = arith.constant 0.353553385 : f32
    %7 = vector.broadcast %cst_6 : f32 to vector<8x32xf32>
    %8 = arith.mulf %6, %7 : vector<8x32xf32>
    %9 = arith.truncf %8 : vector<8x32xf32> to vector<8x32xbf16>
    %c0_7 = arith.constant 0 : index
    %c0_8 = arith.constant 0 : index
    %c0_9 = arith.constant 0 : index
    %10 = vector.load %arg3[%c0_7, %c0_8, %c0_9] : memref<1x16x32xbf16, #tpu.memory_space<vmem>>, vector<1x16x32xbf16>
    %11 = vector.shape_cast %10 : vector<1x16x32xbf16> to vector<16x32xbf16>
    %c0_10 = arith.constant 0 : index
    %c0_11 = arith.constant 0 : index
    %c0_12 = arith.constant 0 : index
    %12 = vector.load %arg4[%c0_10, %c0_11, %c0_12] : memref<1x16x32xbf16, #tpu.memory_space<vmem>>, vector<1x16x32xbf16>
    %13 = vector.shape_cast %12 : vector<1x16x32xbf16> to vector<16x32xbf16>
    %14 = vector.extract_strided_slice %9 {offsets = [0, 0], sizes = [8, 8], strides = [1, 1]} : vector<8x32xbf16> to vector<8x8xbf16>
    %15 = vector.extract_strided_slice %11 {offsets = [0, 0], sizes = [16, 8], strides = [1, 1]} : vector<16x32xbf16> to vector<16x8xbf16>
    %16 = vector.extract_strided_slice %13 {offsets = [0, 0], sizes = [16, 8], strides = [1, 1]} : vector<16x32xbf16> to vector<16x8xbf16>
    %cst_13 = arith.constant dense<0.000000e+00> : vector<8x16xf32>
    %17 = tpu.matmul %14, %15, %cst_13 {dimension_numbers = #tpu.dot_dimension_numbers<[1], [1], [0], [0], [0, 0, 1, 0], [], []>} : vector<8x8xbf16>, vector<16x8xbf16>, vector<8x16xf32> -> vector<8x16xf32>
    %cst_14 = arith.constant dense<0xFF800000> : vector<8xf32>
    %18 = vector.multi_reduction <maximumf>, %17, %cst_14 [1] : vector<8x16xf32> to vector<8xf32>
    %19 = vector.shape_cast %18 : vector<8xf32> to vector<8x1xf32>
    %20 = vector.broadcast %19 : vector<8x1xf32> to vector<8x16xf32>
    %21 = arith.subf %17, %20 : vector<8x16xf32>
    %22 = math.exp %21 : vector<8x16xf32>
    %cst_15 = arith.constant dense<0.000000e+00> : vector<8xf32>
    %23 = vector.multi_reduction <add>, %22, %cst_15 [1] : vector<8x16xf32> to vector<8xf32>
    %24 = vector.shape_cast %23 : vector<8xf32> to vector<8x1xf32>
    %cst_16 = arith.constant 1.000000e+00 : f32
    %25 = vector.broadcast %cst_16 : f32 to vector<8x1xf32>
    %26 = arith.divf %25, %24 : vector<8x1xf32>
    %27 = vector.broadcast %26 : vector<8x1xf32> to vector<8x16xf32>
    %28 = arith.mulf %22, %27 : vector<8x16xf32>
    %29 = arith.truncf %28 : vector<8x16xf32> to vector<8x16xbf16>
    %c0_17 = arith.constant 0 : index
    %c0_18 = arith.constant 0 : index
    %c0_19 = arith.constant 0 : index
    %c0_20 = arith.constant 0 : index
    %30 = vector.load %arg10[%c0_17, %c0_18, %c0_19, %c0_20] : memref<1x4x8x16xbf16, #tpu.memory_space<vmem>>, vector<1x1x8x16xbf16>
    %31 = vector.shape_cast %30 : vector<1x1x8x16xbf16> to vector<8x16xbf16>
    %32 = vector.shape_cast %29 : vector<8x16xbf16> to vector<1x1x8x16xbf16>
    tpu.vector_store %arg10[%c0_17, %c0_18, %c0_19, %c0_20], %32 {strides = array<i32>} : memref<1x4x8x16xbf16, #tpu.memory_space<vmem>>, vector<1x1x8x16xbf16>,
    %33 = arith.truncf %28 : vector<8x16xf32> to vector<8x16xbf16>
    %cst_21 = arith.constant dense<0.000000e+00> : vector<8x8xf32>
    %34 = tpu.matmul %33, %16, %cst_21 {dimension_numbers = #tpu.dot_dimension_numbers<[1], [0], [0], [1], [0, 0, 1, 1], [], []>} : vector<8x16xbf16>, vector<16x8xbf16>, vector<8x8xf32> -> vector<8x8xf32>
    %35 = arith.truncf %34 : vector<8x8xf32> to vector<8x8xbf16>
    %36 = vector.extract_strided_slice %9 {offsets = [0, 8], sizes = [8, 8], strides = [1, 1]} : vector<8x32xbf16> to vector<8x8xbf16>
    %37 = vector.extract_strided_slice %11 {offsets = [0, 8], sizes = [16, 8], strides = [1, 1]} : vector<16x32xbf16> to vector<16x8xbf16>
    %38 = vector.extract_strided_slice %13 {offsets = [0, 8], sizes = [16, 8], strides = [1, 1]} : vector<16x32xbf16> to vector<16x8xbf16>
    %cst_22 = arith.constant dense<0.000000e+00> : vector<8x16xf32>
    %39 = tpu.matmul %36, %37, %cst_22 {dimension_numbers = #tpu.dot_dimension_numbers<[1], [1], [0], [0], [0, 0, 1, 0], [], []>} : vector<8x8xbf16>, vector<16x8xbf16>, vector<8x16xf32> -> vector<8x16xf32>
    %cst_23 = arith.constant dense<0xFF800000> : vector<8xf32>
    %40 = vector.multi_reduction <maximumf>, %39, %cst_23 [1] : vector<8x16xf32> to vector<8xf32>
    %41 = vector.shape_cast %40 : vector<8xf32> to vector<8x1xf32>
    %42 = vector.broadcast %41 : vector<8x1xf32> to vector<8x16xf32>
    %43 = arith.subf %39, %42 : vector<8x16xf32>
    %44 = math.exp %43 : vector<8x16xf32>
    %cst_24 = arith.constant dense<0.000000e+00> : vector<8xf32>
    %45 = vector.multi_reduction <add>, %44, %cst_24 [1] : vector<8x16xf32> to vector<8xf32>
    %46 = vector.shape_cast %45 : vector<8xf32> to vector<8x1xf32>
    %cst_25 = arith.constant 1.000000e+00 : f32
    %47 = vector.broadcast %cst_25 : f32 to vector<8x1xf32>
    %48 = arith.divf %47, %46 : vector<8x1xf32>
    %49 = vector.broadcast %48 : vector<8x1xf32> to vector<8x16xf32>
    %50 = arith.mulf %44, %49 : vector<8x16xf32>
    %51 = arith.truncf %50 : vector<8x16xf32> to vector<8x16xbf16>
    %c0_26 = arith.constant 0 : index
    %c1 = arith.constant 1 : index
    %c0_27 = arith.constant 0 : index
    %c0_28 = arith.constant 0 : index
    %52 = vector.load %arg10[%c0_26, %c1, %c0_27, %c0_28] : memref<1x4x8x16xbf16, #tpu.memory_space<vmem>>, vector<1x1x8x16xbf16>
    %53 = vector.shape_cast %52 : vector<1x1x8x16xbf16> to vector<8x16xbf16>
    %54 = vector.shape_cast %51 : vector<8x16xbf16> to vector<1x1x8x16xbf16>
    tpu.vector_store %arg10[%c0_26, %c1, %c0_27, %c0_28], %54 {strides = array<i32>} : memref<1x4x8x16xbf16, #tpu.memory_space<vmem>>, vector<1x1x8x16xbf16>,
    %55 = arith.truncf %50 : vector<8x16xf32> to vector<8x16xbf16>
    %cst_29 = arith.constant dense<0.000000e+00> : vector<8x8xf32>
    %56 = tpu.matmul %55, %38, %cst_29 {dimension_numbers = #tpu.dot_dimension_numbers<[1], [0], [0], [1], [0, 0, 1, 1], [], []>} : vector<8x16xbf16>, vector<16x8xbf16>, vector<8x8xf32> -> vector<8x8xf32>
    %57 = arith.truncf %56 : vector<8x8xf32> to vector<8x8xbf16>
    %58 = vector.extract_strided_slice %9 {offsets = [0, 16], sizes = [8, 8], strides = [1, 1]} : vector<8x32xbf16> to vector<8x8xbf16>
    %59 = vector.extract_strided_slice %11 {offsets = [0, 16], sizes = [16, 8], strides = [1, 1]} : vector<16x32xbf16> to vector<16x8xbf16>
    %60 = vector.extract_strided_slice %13 {offsets = [0, 16], sizes = [16, 8], strides = [1, 1]} : vector<16x32xbf16> to vector<16x8xbf16>
    %cst_30 = arith.constant dense<0.000000e+00> : vector<8x16xf32>
    %61 = tpu.matmul %58, %59, %cst_30 {dimension_numbers = #tpu.dot_dimension_numbers<[1], [1], [0], [0], [0, 0, 1, 0], [], []>} : vector<8x8xbf16>, vector<16x8xbf16>, vector<8x16xf32> -> vector<8x16xf32>
    %cst_31 = arith.constant dense<0xFF800000> : vector<8xf32>
    %62 = vector.multi_reduction <maximumf>, %61, %cst_31 [1] : vector<8x16xf32> to vector<8xf32>
    %63 = vector.shape_cast %62 : vector<8xf32> to vector<8x1xf32>
    %64 = vector.broadcast %63 : vector<8x1xf32> to vector<8x16xf32>
    %65 = arith.subf %61, %64 : vector<8x16xf32>
    %66 = math.exp %65 : vector<8x16xf32>
    %cst_32 = arith.constant dense<0.000000e+00> : vector<8xf32>
    %67 = vector.multi_reduction <add>, %66, %cst_32 [1] : vector<8x16xf32> to vector<8xf32>
    %68 = vector.shape_cast %67 : vector<8xf32> to vector<8x1xf32>
    %cst_33 = arith.constant 1.000000e+00 : f32
    %69 = vector.broadcast %cst_33 : f32 to vector<8x1xf32>
    %70 = arith.divf %69, %68 : vector<8x1xf32>
    %71 = vector.broadcast %70 : vector<8x1xf32> to vector<8x16xf32>
    %72 = arith.mulf %66, %71 : vector<8x16xf32>
    %73 = arith.truncf %72 : vector<8x16xf32> to vector<8x16xbf16>
    %c0_34 = arith.constant 0 : index
    %c2 = arith.constant 2 : index
    %c0_35 = arith.constant 0 : index
    %c0_36 = arith.constant 0 : index
    %74 = vector.load %arg10[%c0_34, %c2, %c0_35, %c0_36] : memref<1x4x8x16xbf16, #tpu.memory_space<vmem>>, vector<1x1x8x16xbf16>
    %75 = vector.shape_cast %74 : vector<1x1x8x16xbf16> to vector<8x16xbf16>
    %76 = vector.shape_cast %73 : vector<8x16xbf16> to vector<1x1x8x16xbf16>
    tpu.vector_store %arg10[%c0_34, %c2, %c0_35, %c0_36], %76 {strides = array<i32>} : memref<1x4x8x16xbf16, #tpu.memory_space<vmem>>, vector<1x1x8x16xbf16>,
    %77 = arith.truncf %72 : vector<8x16xf32> to vector<8x16xbf16>
    %cst_37 = arith.constant dense<0.000000e+00> : vector<8x8xf32>
    %78 = tpu.matmul %77, %60, %cst_37 {dimension_numbers = #tpu.dot_dimension_numbers<[1], [0], [0], [1], [0, 0, 1, 1], [], []>} : vector<8x16xbf16>, vector<16x8xbf16>, vector<8x8xf32> -> vector<8x8xf32>
    %79 = arith.truncf %78 : vector<8x8xf32> to vector<8x8xbf16>
    %80 = vector.extract_strided_slice %9 {offsets = [0, 24], sizes = [8, 8], strides = [1, 1]} : vector<8x32xbf16> to vector<8x8xbf16>
    %81 = vector.extract_strided_slice %11 {offsets = [0, 24], sizes = [16, 8], strides = [1, 1]} : vector<16x32xbf16> to vector<16x8xbf16>
    %82 = vector.extract_strided_slice %13 {offsets = [0, 24], sizes = [16, 8], strides = [1, 1]} : vector<16x32xbf16> to vector<16x8xbf16>
    %cst_38 = arith.constant dense<0.000000e+00> : vector<8x16xf32>
    %83 = tpu.matmul %80, %81, %cst_38 {dimension_numbers = #tpu.dot_dimension_numbers<[1], [1], [0], [0], [0, 0, 1, 0], [], []>} : vector<8x8xbf16>, vector<16x8xbf16>, vector<8x16xf32> -> vector<8x16xf32>
    %cst_39 = arith.constant dense<0xFF800000> : vector<8xf32>
    %84 = vector.multi_reduction <maximumf>, %83, %cst_39 [1] : vector<8x16xf32> to vector<8xf32>
    %85 = vector.shape_cast %84 : vector<8xf32> to vector<8x1xf32>
    %86 = vector.broadcast %85 : vector<8x1xf32> to vector<8x16xf32>
    %87 = arith.subf %83, %86 : vector<8x16xf32>
    %88 = math.exp %87 : vector<8x16xf32>
    %cst_40 = arith.constant dense<0.000000e+00> : vector<8xf32>
    %89 = vector.multi_reduction <add>, %88, %cst_40 [1] : vector<8x16xf32> to vector<8xf32>
    %90 = vector.shape_cast %89 : vector<8xf32> to vector<8x1xf32>
    %cst_41 = arith.constant 1.000000e+00 : f32
    %91 = vector.broadcast %cst_41 : f32 to vector<8x1xf32>
    %92 = arith.divf %91, %90 : vector<8x1xf32>
    %93 = vector.broadcast %92 : vector<8x1xf32> to vector<8x16xf32>
    %94 = arith.mulf %88, %93 : vector<8x16xf32>
    %95 = arith.truncf %94 : vector<8x16xf32> to vector<8x16xbf16>
    %c0_42 = arith.constant 0 : index
    %c3 = arith.constant 3 : index
    %c0_43 = arith.constant 0 : index
    %c0_44 = arith.constant 0 : index
    %96 = vector.load %arg10[%c0_42, %c3, %c0_43, %c0_44] : memref<1x4x8x16xbf16, #tpu.memory_space<vmem>>, vector<1x1x8x16xbf16>
    %97 = vector.shape_cast %96 : vector<1x1x8x16xbf16> to vector<8x16xbf16>
    %98 = vector.shape_cast %95 : vector<8x16xbf16> to vector<1x1x8x16xbf16>
    tpu.vector_store %arg10[%c0_42, %c3, %c0_43, %c0_44], %98 {strides = array<i32>} : memref<1x4x8x16xbf16, #tpu.memory_space<vmem>>, vector<1x1x8x16xbf16>,
    %99 = arith.truncf %94 : vector<8x16xf32> to vector<8x16xbf16>
    %cst_45 = arith.constant dense<0.000000e+00> : vector<8x8xf32>
    %100 = tpu.matmul %99, %82, %cst_45 {dimension_numbers = #tpu.dot_dimension_numbers<[1], [0], [0], [1], [0, 0, 1, 1], [], []>} : vector<8x16xbf16>, vector<16x8xbf16>, vector<8x8xf32> -> vector<8x8xf32>
    %101 = arith.truncf %100 : vector<8x8xf32> to vector<8x8xbf16>
    %102 = tpu.concatenate %35, %57, %79, %101 in 1 : vector<8x8xbf16>, vector<8x8xbf16>, vector<8x8xbf16>, vector<8x8xbf16> -> vector<8x32xbf16>
    %c0_46 = arith.constant 0 : index
    %c0_47 = arith.constant 0 : index
    %103 = vector.load %arg7[%c0_46, %c0_47] : memref<32x32xbf16, #tpu.memory_space<vmem>>, vector<32x32xbf16>
    %cst_48 = arith.constant dense<0.000000e+00> : vector<8x32xf32>
    %104 = tpu.matmul %102, %103, %cst_48 {dimension_numbers = #tpu.dot_dimension_numbers<[1], [0], [0], [1], [0, 0, 1, 1], [], []>} : vector<8x32xbf16>, vector<32x32xbf16>, vector<8x32xf32> -> vector<8x32xf32>
    %c0_49 = arith.constant 0 : index
    %c0_50 = arith.constant 0 : index
    %105 = vector.load %arg8[%c0_49, %c0_50] : memref<1x32xf32, #tpu.memory_space<vmem>>, vector<1x32xf32>
    %106 = vector.broadcast %105 : vector<1x32xf32> to vector<8x32xf32>
    %107 = arith.addf %104, %106 : vector<8x32xf32>
    %c0_51 = arith.constant 0 : index
    %c0_52 = arith.constant 0 : index
    %c0_53 = arith.constant 0 : index
    %108 = vector.load %arg9[%c0_51, %c0_52, %c0_53] : memref<1x8x32xf32, #tpu.memory_space<vmem>>, vector<1x8x32xf32>
    %109 = vector.shape_cast %108 : vector<1x8x32xf32> to vector<8x32xf32>
    %110 = vector.shape_cast %107 : vector<8x32xf32> to vector<1x8x32xf32>
    tpu.vector_store %arg9[%c0_51, %c0_52, %c0_53], %110 {strides = array<i32>} : memref<1x8x32xf32, #tpu.memory_space<vmem>>, vector<1x8x32xf32>,
    return
  }
  func.func @transform_0(%arg0: i32, %arg1: i32) -> (i32, i32, i32) {
    %c0_i32 = arith.constant 0 : i32
    %c0_i32_0 = arith.constant 0 : i32
    return %arg0, %arg1, %c0_i32 : i32, i32, i32
  }
  func.func @transform_1(%arg0: i32, %arg1: i32) -> (i32, i32, i32) {
    %c0_i32 = arith.constant 0 : i32
    %c0_i32_0 = arith.constant 0 : i32
    %c0_i32_1 = arith.constant 0 : i32
    return %arg0, %c0_i32, %c0_i32_0 : i32, i32, i32
  }
  func.func @transform_2(%arg0: i32, %arg1: i32) -> (i32, i32, i32) {
    %c0_i32 = arith.constant 0 : i32
    %c0_i32_0 = arith.constant 0 : i32
    %c0_i32_1 = arith.constant 0 : i32
    return %arg0, %c0_i32, %c0_i32_0 : i32, i32, i32
  }
  func.func @transform_3(%arg0: i32, %arg1: i32) -> (i32, i32) {
    %c0_i32 = arith.constant 0 : i32
    %c0_i32_0 = arith.constant 0 : i32
    %c0_i32_1 = arith.constant 0 : i32
    return %c0_i32, %c0_i32_0 : i32, i32
  }
  func.func @transform_4(%arg0: i32, %arg1: i32) -> (i32, i32) {
    %c0_i32 = arith.constant 0 : i32
    %c0_i32_0 = arith.constant 0 : i32
    %c0_i32_1 = arith.constant 0 : i32
    return %c0_i32, %c0_i32_0 : i32, i32
  }
  func.func @transform_5(%arg0: i32, %arg1: i32) -> (i32, i32) {
    %c0_i32 = arith.constant 0 : i32
    %c0_i32_0 = arith.constant 0 : i32
    %c0_i32_1 = arith.constant 0 : i32
    return %c0_i32, %c0_i32_0 : i32, i32
  }
  func.func @transform_6(%arg0: i32, %arg1: i32) -> (i32, i32) {
    %c0_i32 = arith.constant 0 : i32
    %c0_i32_0 = arith.constant 0 : i32
    %c0_i32_1 = arith.constant 0 : i32
    return %c0_i32, %c0_i32_0 : i32, i32
  }
  func.func @transform_7(%arg0: i32, %arg1: i32) -> (i32, i32, i32) {
    %c0_i32 = arith.constant 0 : i32
    %c0_i32_0 = arith.constant 0 : i32
    return %arg0, %arg1, %c0_i32 : i32, i32, i32
  }
  func.func @transform_8(%arg0: i32, %arg1: i32) -> (i32, i32, i32, i32) {
    %c0_i32 = arith.constant 0 : i32
    %c0_i32_0 = arith.constant 0 : i32
    %c0_i32_1 = arith.constant 0 : i32
    return %arg0, %c0_i32, %arg1, %c0_i32_0 : i32, i32, i32, i32
  }
}

</mosaic_0001>

<llo_original>
// kernel: multi_head_attention.1
$region0: #{multi_head_attention.1}
  #allocation0 [shape = 'u32[]', space=smem, size = 0x4, offset = 0x4, fixed_abs, tag = 'smem constant byte address 0x4 - core index']
  #allocation1 [shape = 'u32[72,128]{1,0:T(1,128)}', space=vmem, size = 0x9000, scoped, tag = 'internal scratch']
  %s0 = inlined_call_operand.vmem [shape: bf16[2,8,32], index: 0, kind: input, shape index: {}]
  %s1 = inlined_call_operand.vmem [shape: bf16[2,16,32], index: 1, kind: input, shape index: {}]
  %s2 = inlined_call_operand.vmem [shape: bf16[2,16,32], index: 2, kind: input, shape index: {}]
  %s3 = inlined_call_operand.vmem [shape: bf16[32,32], index: 3, kind: input, shape index: {}]
  %s4 = inlined_call_operand.vmem [shape: f32[1,32], index: 4, kind: input, shape index: {}]
  %s5 = inlined_call_operand.vmem [shape: bf16[32,32], index: 5, kind: input, shape index: {}]
  %s6 = inlined_call_operand.vmem [shape: f32[1,32], index: 6, kind: input, shape index: {}]
  %s7 = inlined_call_operand.hbm [shape: f32[2,8,32], index: 7, kind: output, shape index: {0}]
  %s8 = inlined_call_operand.vmem [shape: bf16[2,4,8,16], index: 8, kind: output, shape index: {1}]
  %9 = xla_tuple %s7, %s8
  %s10 = sld [smem:[#allocation0]]
  $region69: #{multi_head_attention.1} parent=0
    _
  %s12 = ssub.s32 1, %s10
  %s13 = scalar_select 0, %s12, %s10
  $region1: #{multi_head_attention.1} parent=0
    #allocation2 [shape = 'u8[8192]{0}', space=vmem, size = 0x2000, scoped, tag = 'output window, operand 0']
    #allocation3 [shape = 's32[2]{0}', space=sflag, size = 0x8, scoped, tag = 'scoped memory for multi_head_attention.1']
    %14 = vsyncpa [#allocation3], 0
    %s15 = scalar_lea.sflag [#allocation3], 1
    %16 = vsyncpa %s15, 0
    loop: start=0, step=1, limit=4
    $region2: #{multi_head_attention.1} parent=1 // loop_pre_header
      _
    $region3: #{multi_head_attention.1} parent=1 // loop_header
      %s18 = sphi 0, %s22
      %p19 = scmp.ge.s32.totalorder %s18, 4
      %s25 = sphi 0, %s37
      %s26 = sphi 0, %s33
      %s27 = sphi 0, %s25
      %s28 = sphi 0, %s26
      %s29 = sphi 0, %s27
      %s30 = sphi 0, %s28
      %s42 = sphi 0, %s44
      %s45 = sphi 0, %s42
      %s46 = sphi 0, %s45
      %s62 = sphi 0, %s46
      %s68 = sphi 0, %s70
      %s71 = sphi 0, %s68
      %s72 = sphi 0, %s71
      %s88 = sphi 0, %s72
      %s94 = sphi 0, %s96
      %s97 = sphi 0, %s94
      %s98 = sphi 0, %s97
      %s114 = sphi 0, %s98
      %s118 = sphi 0, %s118
      %s120 = sphi 0, %s118
      %s121 = sphi 0, %s120
      %s135 = sphi 0, %s121
      %s139 = sphi 0, %s139
      %s141 = sphi 0, %s139
      %s142 = sphi 0, %s141
      %s156 = sphi 0, %s142
      %s160 = sphi 0, %s160
      %s162 = sphi 0, %s160
      %s163 = sphi 0, %s162
      %s177 = sphi 0, %s163
      %s181 = sphi 0, %s181
      %s183 = sphi 0, %s181
      %s184 = sphi 0, %s183
      %s198 = sphi 0, %s184
      %s206 = sphi 0, %s208
      %s209 = sphi 0, %s206
      %s210 = sphi 0, %s209
      %s226 = sphi 0, %s210
      %s234 = sphi 0, %s236
      %s237 = sphi 0, %s234
      %s238 = sphi 0, %s237
      %s254 = sphi 0, %s238
    $region4: #{multi_head_attention.1} parent=1 // loop_header_branch
      %21 = sbr.rel (%p19) target = $region8
    $region5: #{multi_head_attention.1} parent=1 // loop_body
      %s23 = ssub.s32 %s18, 1
      %s24 = ssub.s32 %s18, 2
      %s31 = sadd.s32 1, %s26
      %p32 = scmp.ge.s32.totalorder %s31, 1
      %s33 = scalar_select %p32, 0, %s31
      %s34 = sadd.s32 1, %s25
      %s35 = scalar_select %p32, %s34, %s25
      %p36 = scmp.ge.s32.totalorder %s35, 2
      %s37 = scalar_select %p36, 0, %s35
      %s38 = ssub.s32 %s25, %s37
      %s39 = ssub.s32 %s26, %s33
      %s40 = sor.u32 %s38, %s39
      %p41 = scmp.eq.s32.totalorder %s40, 0
      %s43 = sadd.s32 %s42, 1
      %s44 = scalar_select %p41, %s42, %s43
      %p47 = pneg %p41
      %p48 = scmp.eq.s32.totalorder %s18, 1
      %p49 = por %p47, %p48
      %p50 = scmp.ne.s32.totalorder %s42, %s45
      %p51 = scmp.eq.s32.totalorder %s18, 0
      %p52 = por %p50, %p51
      %p53 = scmp.ne.s32.totalorder %s42, %s45
      %p54 = scmp.eq.s32.totalorder %s23, 1
      %p55 = por %p53, %p54
      %p56 = scmp.ne.s32.totalorder %s45, %s46
      %p57 = scmp.eq.s32.totalorder %s23, 0
      %p58 = por %p56, %p57
      %p59 = scmp.ne.s32.totalorder %s45, %s46
      %p60 = scmp.eq.s32.totalorder %s24, 1
      %p61 = por %p59, %p60
      %p63 = scmp.ne.s32.totalorder %s46, %s62
      %p64 = scmp.eq.s32.totalorder %s24, 0
      %p65 = por %p63, %p64
      %s66 = ssub.s32 %s25, %s37
      %p67 = scmp.eq.s32.totalorder %s66, 0
      %s69 = sadd.s32 %s68, 1
      %s70 = scalar_select %p67, %s68, %s69
      %p73 = pneg %p67
      %p74 = scmp.eq.s32.totalorder %s18, 1
      %p75 = por %p73, %p74
      %p76 = scmp.ne.s32.totalorder %s68, %s71
      %p77 = scmp.eq.s32.totalorder %s18, 0
      %p78 = por %p76, %p77
      %p79 = scmp.ne.s32.totalorder %s68, %s71
      %p80 = scmp.eq.s32.totalorder %s23, 1
      %p81 = por %p79, %p80
      %p82 = scmp.ne.s32.totalorder %s71, %s72
      %p83 = scmp.eq.s32.totalorder %s23, 0
      %p84 = por %p82, %p83
      %p85 = scmp.ne.s32.totalorder %s71, %s72
      %p86 = scmp.eq.s32.totalorder %s24, 1
      %p87 = por %p85, %p86
      %p89 = scmp.ne.s32.totalorder %s72, %s88
      %p90 = scmp.eq.s32.totalorder %s24, 0
      %p91 = por %p89, %p90
      %s92 = ssub.s32 %s25, %s37
      %p93 = scmp.eq.s32.totalorder %s92, 0
      %s95 = sadd.s32 %s94, 1
      %s96 = scalar_select %p93, %s94, %s95
      %p99 = pneg %p93
      %p100 = scmp.eq.s32.totalorder %s18, 1
      %p101 = por %p99, %p100
      %p102 = scmp.ne.s32.totalorder %s94, %s97
      %p103 = scmp.eq.s32.totalorder %s18, 0
      %p104 = por %p102, %p103
      %p105 = scmp.ne.s32.totalorder %s94, %s97
      %p106 = scmp.eq.s32.totalorder %s23, 1
      %p107 = por %p105, %p106
      %p108 = scmp.ne.s32.totalorder %s97, %s98
      %p109 = scmp.eq.s32.totalorder %s23, 0
      %p110 = por %p108, %p109
      %p111 = scmp.ne.s32.totalorder %s97, %s98
      %p112 = scmp.eq.s32.totalorder %s24, 1
      %p113 = por %p111, %p112
      %p115 = scmp.ne.s32.totalorder %s98, %s114
      %p116 = scmp.eq.s32.totalorder %s24, 0
      %p117 = por %p115, %p116
      %s119 = sadd.s32 %s118, 1
      %p122 = scmp.eq.s32.totalorder %s18, 1
      %p123 = scmp.ne.s32.totalorder %s118, %s120
      %p124 = scmp.eq.s32.totalorder %s18, 0
      %p125 = por %p123, %p124
      %p126 = scmp.ne.s32.totalorder %s118, %s120
      %p127 = scmp.eq.s32.totalorder %s23, 1
      %p128 = por %p126, %p127
      %p129 = scmp.ne.s32.totalorder %s120, %s121
      %p130 = scmp.eq.s32.totalorder %s23, 0
      %p131 = por %p129, %p130
      %p132 = scmp.ne.s32.totalorder %s120, %s121
      %p133 = scmp.eq.s32.totalorder %s24, 1
      %p134 = por %p132, %p133
      %p136 = scmp.ne.s32.totalorder %s121, %s135
      %p137 = scmp.eq.s32.totalorder %s24, 0
      %p138 = por %p136, %p137
      %s140 = sadd.s32 %s139, 1
      %p143 = scmp.eq.s32.totalorder %s18, 1
      %p144 = scmp.ne.s32.totalorder %s139, %s141
      %p145 = scmp.eq.s32.totalorder %s18, 0
      %p146 = por %p144, %p145
      %p147 = scmp.ne.s32.totalorder %s139, %s141
      %p148 = scmp.eq.s32.totalorder %s23, 1
      %p149 = por %p147, %p148
      %p150 = scmp.ne.s32.totalorder %s141, %s142
      %p151 = scmp.eq.s32.totalorder %s23, 0
      %p152 = por %p150, %p151
      %p153 = scmp.ne.s32.totalorder %s141, %s142
      %p154 = scmp.eq.s32.totalorder %s24, 1
      %p155 = por %p153, %p154
      %p157 = scmp.ne.s32.totalorder %s142, %s156
      %p158 = scmp.eq.s32.totalorder %s24, 0
      %p159 = por %p157, %p158
      %s161 = sadd.s32 %s160, 1
      %p164 = scmp.eq.s32.totalorder %s18, 1
      %p165 = scmp.ne.s32.totalorder %s160, %s162
      %p166 = scmp.eq.s32.totalorder %s18, 0
      %p167 = por %p165, %p166
      %p168 = scmp.ne.s32.totalorder %s160, %s162
      %p169 = scmp.eq.s32.totalorder %s23, 1
      %p170 = por %p168, %p169
      %p171 = scmp.ne.s32.totalorder %s162, %s163
      %p172 = scmp.eq.s32.totalorder %s23, 0
      %p173 = por %p171, %p172
      %p174 = scmp.ne.s32.totalorder %s162, %s163
      %p175 = scmp.eq.s32.totalorder %s24, 1
      %p176 = por %p174, %p175
      %p178 = scmp.ne.s32.totalorder %s163, %s177
      %p179 = scmp.eq.s32.totalorder %s24, 0
      %p180 = por %p178, %p179
      %s182 = sadd.s32 %s181, 1
      %p185 = scmp.eq.s32.totalorder %s18, 1
      %p186 = scmp.ne.s32.totalorder %s181, %s183
      %p187 = scmp.eq.s32.totalorder %s18, 0
      %p188 = por %p186, %p187
      %p189 = scmp.ne.s32.totalorder %s181, %s183
      %p190 = scmp.eq.s32.totalorder %s23, 1
      %p191 = por %p189, %p190
      %p192 = scmp.ne.s32.totalorder %s183, %s184
      %p193 = scmp.eq.s32.totalorder %s23, 0
      %p194 = por %p192, %p193
      %p195 = scmp.ne.s32.totalorder %s183, %s184
      %p196 = scmp.eq.s32.totalorder %s24, 1
      %p197 = por %p195, %p196
      %p199 = scmp.ne.s32.totalorder %s184, %s198
      %p200 = scmp.eq.s32.totalorder %s24, 0
      %p201 = por %p199, %p200
      %s202 = ssub.s32 %s25, %s37
      %s203 = ssub.s32 %s26, %s33
      %s204 = sor.u32 %s202, %s203
      %p205 = scmp.eq.s32.totalorder %s204, 0
      %s207 = sadd.s32 %s206, 1
      %s208 = scalar_select %p205, %s206, %s207
      %p211 = pneg %p205
      %p212 = scmp.eq.s32.totalorder %s18, 1
      %p213 = por %p211, %p212
      %p214 = scmp.ne.s32.totalorder %s206, %s209
      %p215 = scmp.eq.s32.totalorder %s18, 0
      %p216 = por %p214, %p215
      %p217 = scmp.ne.s32.totalorder %s206, %s209
      %p218 = scmp.eq.s32.totalorder %s23, 1
      %p219 = por %p217, %p218
      %p220 = scmp.ne.s32.totalorder %s209, %s210
      %p221 = scmp.eq.s32.totalorder %s23, 0
      %p222 = por %p220, %p221
      %p223 = scmp.ne.s32.totalorder %s209, %s210
      %p224 = scmp.eq.s32.totalorder %s24, 1
      %p225 = por %p223, %p224
      %p227 = scmp.ne.s32.totalorder %s210, %s226
      %p228 = scmp.eq.s32.totalorder %s24, 0
      %p229 = por %p227, %p228
      %s230 = ssub.s32 %s25, %s37
      %s231 = ssub.s32 %s26, %s33
      %s232 = sor.u32 %s230, %s231
      %p233 = scmp.eq.s32.totalorder %s232, 0
      %s235 = sadd.s32 %s234, 1
      %s236 = scalar_select %p233, %s234, %s235
      %p239 = pneg %p233
      %p240 = scmp.eq.s32.totalorder %s18, 1
      %p241 = por %p239, %p240
      %p242 = scmp.ne.s32.totalorder %s234, %s237
      %p243 = scmp.eq.s32.totalorder %s18, 0
      %p244 = por %p242, %p243
      %p245 = scmp.ne.s32.totalorder %s234, %s237
      %p246 = scmp.eq.s32.totalorder %s23, 1
      %p247 = por %p245, %p246
      %p248 = scmp.ne.s32.totalorder %s237, %s238
      %p249 = scmp.eq.s32.totalorder %s23, 0
      %p250 = por %p248, %p249
      %p251 = scmp.ne.s32.totalorder %s237, %s238
      %p252 = scmp.eq.s32.totalorder %s24, 1
      %p253 = por %p251, %p252
      %p255 = scmp.ne.s32.totalorder %s238, %s254
      %p256 = scmp.eq.s32.totalorder %s24, 0
      %p257 = por %p255, %p256
      %p258 = scmp.le.s32.totalorder 1, %s18
      %p259 = scmp.lt.s32.totalorder %s18, 3
      %p260 = pnand %p258, %p259
      %p261 = pneg %p260
      // Predicated region
      $region9: #{multi_head_attention.1} parent=5 // pred_check
        _
      $region10: #{multi_head_attention.1} parent=5 // pred_check_branch
        %263 = sbr.rel (%p260) target = $region12
      $region11: #{multi_head_attention.1} parent=5 // pred_region
        %s264 = ssub.s32 %s18, 1
        // Predicated region
        $region13: #{multi_head_attention.1} parent=11 // pred_check
          %p265 = pneg %p131
        $region14: #{multi_head_attention.1} parent=11 // pred_check_branch
          %267 = sbr.rel (%p265) target = $region16
        $region15: #{multi_head_attention.1} parent=11 // pred_region
          _
        $region16: #{multi_head_attention.1} parent=11 // pred_fallthru
          _
        // Predicated region
        $region17: #{multi_head_attention.1} parent=11 // pred_check
          %p268 = pneg %p152
        $region18: #{multi_head_attention.1} parent=11 // pred_check_branch
          %270 = sbr.rel (%p268) target = $region20
        $region19: #{multi_head_attention.1} parent=11 // pred_region
          _
        $region20: #{multi_head_attention.1} parent=11 // pred_fallthru
          _
        // Predicated region
        $region21: #{multi_head_attention.1} parent=11 // pred_check
          %p271 = pneg %p173
        $region22: #{multi_head_attention.1} parent=11 // pred_check_branch
          %273 = sbr.rel (%p271) target = $region24
        $region23: #{multi_head_attention.1} parent=11 // pred_region
          _
        $region24: #{multi_head_attention.1} parent=11 // pred_fallthru
          _
        // Predicated region
        $region25: #{multi_head_attention.1} parent=11 // pred_check
          %p274 = pneg %p194
        $region26: #{multi_head_attention.1} parent=11 // pred_check_branch
          %276 = sbr.rel (%p274) target = $region28
        $region27: #{multi_head_attention.1} parent=11 // pred_region
          _
        $region28: #{multi_head_attention.1} parent=11 // pred_fallthru
          _
      $region12: #{multi_head_attention.1} parent=5 // pred_fallthru
        _
      %p277 = scmp.lt.s32.totalorder %s18, 2
      // Predicated region
      $region29: #{multi_head_attention.1} parent=5 // pred_check
        %p278 = pneg %p277
      $region30: #{multi_head_attention.1} parent=5 // pred_check_branch
        %280 = sbr.rel (%p278) target = $region32
      $region31: #{multi_head_attention.1} parent=5 // pred_region
        // Predicated region
        $region33: #{multi_head_attention.1} parent=31 // pred_check
          %p281 = pneg %p52
        $region34: #{multi_head_attention.1} parent=31 // pred_check_branch
          %283 = sbr.rel (%p281) target = $region36
        $region35: #{multi_head_attention.1} parent=31 // pred_region
          %p284 = scmp.lt.s32.totalorder %s25, 1
          %s285 = scalar_select %p284, %s25, 1
          %p286 = scmp.lt.s32.totalorder %s26, 0
          %s287 = scalar_select %p286, %s26, 0
          %s288 = sadd.s32 %s287, %s285
          %s289 = smul.addr %s288, 4
          %s290 = scalar_lea.vmem %s0, %s289
        $region36: #{multi_head_attention.1} parent=31 // pred_fallthru
          _
        // Predicated region
        $region37: #{multi_head_attention.1} parent=31 // pred_check
          %p291 = pneg %p78
        $region38: #{multi_head_attention.1} parent=31 // pred_check_branch
          %293 = sbr.rel (%p291) target = $region40
        $region39: #{multi_head_attention.1} parent=31 // pred_region
          %p294 = scmp.lt.s32.totalorder %s25, 1
          %s295 = scalar_select %p294, %s25, 1
          %s296 = smul.addr %s295, 2
          %s297 = smul.addr %s296, 4
          %s298 = scalar_lea.vmem %s1, %s297
        $region40: #{multi_head_attention.1} parent=31 // pred_fallthru
          _
        // Predicated region
        $region41: #{multi_head_attention.1} parent=31 // pred_check
          %p299 = pneg %p104
        $region42: #{multi_head_attention.1} parent=31 // pred_check_branch
          %301 = sbr.rel (%p299) target = $region44
        $region43: #{multi_head_attention.1} parent=31 // pred_region
          %p302 = scmp.lt.s32.totalorder %s25, 1
          %s303 = scalar_select %p302, %s25, 1
          %s304 = smul.addr %s303, 2
          %s305 = smul.addr %s304, 4
          %s306 = scalar_lea.vmem %s2, %s305
        $region44: #{multi_head_attention.1} parent=31 // pred_fallthru
          _
      $region32: #{multi_head_attention.1} parent=5 // pred_fallthru
        _
      %p307 = scmp.le.s32.totalorder 1, %s18
      %p308 = scmp.lt.s32.totalorder %s18, 3
      %p309 = pnand %p307, %p308
      %p310 = pneg %p309
      // Predicated region
      $region45: #{multi_head_attention.1} parent=5 // pred_check
        _
      $region46: #{multi_head_attention.1} parent=5 // pred_check_branch
        %312 = sbr.rel (%p309) target = $region48
      $region47: #{multi_head_attention.1} parent=5 // pred_region
        %s313 = ssub.s32 %s18, 1
        %p314 = scmp.lt.s32.totalorder %s27, 1
        %s315 = scalar_select %p314, %s27, 1
        %p316 = scmp.lt.s32.totalorder %s28, 0
        %s317 = scalar_select %p316, %s28, 0
        %s318 = sadd.s32 %s317, %s315
        %s319 = smul.addr %s318, 4
        %s320 = scalar_lea.vmem %s0, %s319
        %p321 = pneg %p58
        %p322 = pneg %p55
        %p323 = scmp.lt.s32.totalorder %s27, 1
        %s324 = scalar_select %p323, %s27, 1
        %s325 = smul.addr %s324, 2
        %s326 = smul.addr %s325, 4
        %s327 = scalar_lea.vmem %s1, %s326
        %p328 = pneg %p84
        %p329 = pneg %p81
        %p330 = scmp.lt.s32.totalorder %s27, 1
        %s331 = scalar_select %p330, %s27, 1
        %s332 = smul.addr %s331, 2
        %s333 = smul.addr %s332, 4
        %s334 = scalar_lea.vmem %s2, %s333
        %p335 = pneg %p110
        %p336 = pneg %p107
        %p337 = pneg %p131
        %p338 = pneg %p128
        %p339 = pneg %p152
        %p340 = pneg %p149
        %p341 = pneg %p173
        %p342 = pneg %p170
        %p343 = pneg %p194
        %p344 = pneg %p191
        %p345 = pneg %p222
        %p346 = pneg %p219
        %s347 = sand.u32 %s209, 1
        %s348 = scalar_lea.sflag [#allocation3], %s347
        %s349 = sand.u32 %s209, 1
        %s350 = smul.addr %s349, 8
        %s351 = scalar_lea.vmem [#allocation2], %s350
        %p352 = pneg %p250
        %p353 = pneg %p247
        %p354 = scmp.lt.s32.totalorder %s27, 1
        %s355 = scalar_select %p354, %s27, 1
        %p356 = scmp.lt.s32.totalorder %s28, 0
        %s357 = scalar_select %p356, %s28, 0
        %s358 = smul.addr %s355, 4
        %s359 = sadd.s32 %s357, %s358
        %s360 = smul.addr %s359, 4
        %s361 = scalar_lea.vmem %s8, %s360
        %p362 = scmp.lt.s32.totalorder %s27, 1
        %s363 = scalar_select %p362, %s27, 1
        %p364 = scmp.lt.s32.totalorder %s28, 0
        %s365 = scalar_select %p364, %s28, 0
        %s366 = sadd.s32 %s365, %s363
        %s367 = smul.addr %s366, 4
        %s368 = scalar_lea.vmem %s0, %s367
        %p369 = scmp.lt.s32.totalorder %s27, 1
        %s370 = scalar_select %p369, %s27, 1
        %s371 = smul.addr %s370, 2
        %s372 = smul.addr %s371, 4
        %s373 = scalar_lea.vmem %s1, %s372
        %p374 = scmp.lt.s32.totalorder %s27, 1
        %s375 = scalar_select %p374, %s27, 1
        %s376 = smul.addr %s375, 2
        %s377 = smul.addr %s376, 4
        %s378 = scalar_lea.vmem %s2, %s377
        %p379 = scmp.lt.s32.totalorder %s27, 1
        %s380 = scalar_select %p379, %s27, 1
        %p381 = scmp.lt.s32.totalorder %s28, 0
        %s382 = scalar_select %p381, %s28, 0
        %s383 = smul.addr %s380, 4
        %s384 = sadd.s32 %s382, %s383
        %s385 = smul.addr %s384, 4
        %s386 = scalar_lea.vmem %s8, %s385
        %v388 = vld [vmem:[%s368] sm:$0xf]
        %v389 = vld [vmem:[%s3] sm:$0xf]
        %v390 = vld [vmem:[%s3 + $0x4] sm:$0xf]
        %v391 = vld [vmem:[%s3 + $0x8] sm:$0xf]
        %v392 = vld [vmem:[%s3 + $0xc] sm:$0xf]
        %v393 = vld [vmem:[%s4] sm:$0x1]
        %v395 = vperm.slane %v393, 0
        %v401 = vunpack.c.l.b16 %v389
        %v402 = vunpack.c.l.b16 %v390
        %v403 = vunpack.c.l.b16 %v391
        %v404 = vunpack.c.l.b16 %v392
        %v405 = vpack.c.b16 %v402, %v401
        %v406 = vpack.c.b16 %v404, %v403
        %vm409 = vcmask 261120
        %v411 = vsel %vm409, %v388, 0
        %413 = vmatpush.bf16.msra.mxu0 0
        %414 = vmatpush.bf16.msra.mxu0 0
        %415 = vmatpush.bf16.msra.mxu0 0
        %416 = vmatpush.bf16.msra.mxu0 0
        %417 = vmatpush.bf16.msra.mxu0 0
        %418 = vmatpush.bf16.msra.mxu0 0
        %419 = vmatpush.bf16.msra.mxu0 %v406
        %420 = vmatpush.bf16.msra.mxu0 %v405
        %421 = vmatmul.bf16.gmra.mxu0 %v411
        %v422 = vpop.f32.mrf.mxu0
        %v423 = vadd.f32 %v395, %v422
        %v424 = vpop.f32.mrf.mxu0
        %425 = vdwg.mxu0
        %v426 = vmul.f32 %v423, 0.35355338
        %v427 = vpack.c.bf16 %v426, %v426
        %v428 = vld [vmem:[%s373] sm:$0xf]
        %v429 = vld [vmem:[%s373 + $0x4] sm:$0xf]
        %v430 = vld [vmem:[%s378] sm:$0xf]
        %v431 = vld [vmem:[%s378 + $0x4] sm:$0xf]
        %v434 = vunpack.c.l.b16 %v428
        %v435 = vunpack.c.l.b16 %v429
        %v436 = vpack.c.b16 %v435, %v434
        %vm437 = vcmask 64512
        %v439 = vsel %vm437, %v427, 0
        %v442 = vsel %vm437, %v436, 0
        %444 = vmatpush.bf16.xpose.msra.mxu0 0
        %445 = vmatpush.bf16.xpose.msra.mxu0 0
        %446 = vmatpush.bf16.xpose.msra.mxu0 0
        %447 = vmatpush.bf16.xpose.msra.mxu0 0
        %448 = vmatpush.bf16.xpose.msra.mxu0 0
        %449 = vmatpush.bf16.xpose.msra.mxu0 0
        %450 = vmatpush.bf16.xpose.msra.mxu0 0
        %451 = vmatpush.bf16.xpose.msra.mxu0 %v442
        %452 = vmatmul.bf16.gmra.mxu0 %v439
        %v453 = vpop.f32.mrf.mxu0
        %v454 = vadd.f32 0.0, %v453
        %v455 = vpop.f32.mrf.mxu0
        %456 = vdwg.mxu0
        %vm457 = vcmask 130048
        %v458 = vsel %vm457, %v454, -inf
        %459 = vmax.xlane.f32.xlu0 %v458
        %v460 = vpop.xlane.xlu0 %459
        %v461 = vsub.f32 %v454, %v460
        %v462 = vmul.f32 %v461, 1.442695
        %v463 = vpow.pop %v462
        %v464 = vsel %vm457, %v463, 0.0
        %465 = vadd.xlane.f32.xlu0 %v464
        %v466 = vpop.xlane.xlu0 %465
        %v467 = vrcp.pop %v466
        %v468 = vmul.f32 %v466, %v467
        %v469 = vsub.f32 1.0, %v468
        %v470 = vmul.f32 %v467, %v469
        %v471 = vadd.f32 %v467, %v470
        %vm472 = vweird.f32 %v466
        %vm473 = vweird.f32 %v467
        %vm474 = vmor %vm472, %vm473
        %v475 = vsel %vm474, %v467, %v471
        %v476 = vand.u32 2147483647, %v466
        %vm477 = vcmp.eq.f32.partialorder %v476, 8.507059e+37
        %v478 = vand.u32 %v466, 2147483648
        %v479 = vor.u32 1.1754944e-38, %v478
        %v480 = vsel %vm477, %v479, %v475
        %v481 = vmul.f32 1.0, %v480
        %v482 = vmul.f32 %v463, %v481
        %v483 = vpack.c.bf16 %v482, %v482
        %vm484 = vcmask 125952
        %485 = vst.msk [vmem:[%s386] sm:$0xf] %vm484, %v483
        %v488 = vunpack.c.l.b16 %v430
        %v489 = vunpack.c.l.b16 %v431
        %v490 = vpack.c.b16 %v489, %v488
        %v493 = vsel %vm457, %v483, 0
        %495 = vmatpush.bf16.msra.mxu0 0
        %496 = vmatpush.bf16.msra.mxu0 0
        %497 = vmatpush.bf16.msra.mxu0 0
        %498 = vmatpush.bf16.msra.mxu0 0
        %499 = vmatpush.bf16.msra.mxu0 0
        %500 = vmatpush.bf16.msra.mxu0 0
        %501 = vmatpush.bf16.msra.mxu0 0
        %502 = vmatpush.bf16.msra.mxu0 %v490
        %503 = vmatmul.bf16.gmra.mxu0 %v493
        %v504 = vpop.f32.mrf.mxu0
        %v505 = vadd.f32 0.0, %v504
        %v506 = vpop.f32.mrf.mxu0
        %507 = vdwg.mxu0
        %v508 = vpack.c.bf16 %v505, %v505
        %v510 = vunpack.c.l.b16 %v427
        %v511 = vpack.c.b16 %v510, %v510
        %512 = vrot.lane.b32.xlu0 %v511, 120
        %v513 = vpop.permute.xlu0 %512
        %514 = vrot.lane.b32.xlu0 %v436, 120
        %v515 = vpop.permute.xlu0 %514
        %v517 = vsel %vm437, %v513, 0
        %v520 = vsel %vm437, %v515, 0
        %522 = vmatpush.bf16.xpose.msra.mxu0 0
        %523 = vmatpush.bf16.xpose.msra.mxu0 0
        %524 = vmatpush.bf16.xpose.msra.mxu0 0
        %525 = vmatpush.bf16.xpose.msra.mxu0 0
        %526 = vmatpush.bf16.xpose.msra.mxu0 0
        %527 = vmatpush.bf16.xpose.msra.mxu0 0
        %528 = vmatpush.bf16.xpose.msra.mxu0 0
        %529 = vmatpush.bf16.xpose.msra.mxu0 %v520
        %530 = vmatmul.bf16.gmra.mxu0 %v517
        %v531 = vpop.f32.mrf.mxu0
        %v532 = vadd.f32 0.0, %v531
        %v533 = vpop.f32.mrf.mxu0
        %534 = vdwg.mxu0
        %v535 = vsel %vm457, %v532, -inf
        %536 = vmax.xlane.f32.xlu0 %v535
        %v537 = vpop.xlane.xlu0 %536
        %v538 = vsub.f32 %v532, %v537
        %v539 = vmul.f32 %v538, 1.442695
        %v540 = vpow.pop %v539
        %v541 = vsel %vm457, %v540, 0.0
        %542 = vadd.xlane.f32.xlu0 %v541
        %v543 = vpop.xlane.xlu0 %542
        %v544 = vrcp.pop %v543
        %v545 = vmul.f32 %v543, %v544
        %v546 = vsub.f32 1.0, %v545
        %v547 = vmul.f32 %v544, %v546
        %v548 = vadd.f32 %v544, %v547
        %vm549 = vweird.f32 %v543
        %vm550 = vweird.f32 %v544
        %vm551 = vmor %vm549, %vm550
        %v552 = vsel %vm551, %v544, %v548
        %v553 = vand.u32 2147483647, %v543
        %vm554 = vcmp.eq.f32.partialorder %v553, 8.507059e+37
        %v555 = vand.u32 %v543, 2147483648
        %v556 = vor.u32 1.1754944e-38, %v555
        %v557 = vsel %vm554, %v556, %v552
        %v558 = vmul.f32 1.0, %v557
        %v559 = vmul.f32 %v540, %v558
        %v560 = vpack.c.bf16 %v559, %v559
        %s561 = scalar_lea.vmem %s386, 4
        %562 = vst.msk [vmem:[%s561] sm:$0xf] %vm484, %v560
        %563 = vrot.lane.b32.xlu0 %v490, 120
        %v564 = vpop.permute.xlu0 %563
        %v567 = vsel %vm457, %v560, 0
        %569 = vmatpush.bf16.msra.mxu0 0
        %570 = vmatpush.bf16.msra.mxu0 0
        %571 = vmatpush.bf16.msra.mxu0 0
        %572 = vmatpush.bf16.msra.mxu0 0
        %573 = vmatpush.bf16.msra.mxu0 0
        %574 = vmatpush.bf16.msra.mxu0 0
        %575 = vmatpush.bf16.msra.mxu0 0
        %576 = vmatpush.bf16.msra.mxu0 %v564
        %577 = vmatmul.bf16.gmra.mxu0 %v567
        %v578 = vpop.f32.mrf.mxu0
        %v579 = vadd.f32 0.0, %v578
        %v580 = vpop.f32.mrf.mxu0
        %581 = vdwg.mxu0
        %v582 = vpack.c.bf16 %v579, %v579
        %583 = vrot.lane.b32.xlu0 %v511, 112
        %v584 = vpop.permute.xlu0 %583
        %585 = vrot.lane.b32.xlu0 %v436, 112
        %v586 = vpop.permute.xlu0 %585
        %v588 = vsel %vm437, %v584, 0
        %v591 = vsel %vm437, %v586, 0
        %593 = vmatpush.bf16.xpose.msra.mxu0 0
        %594 = vmatpush.bf16.xpose.msra.mxu0 0
        %595 = vmatpush.bf16.xpose.msra.mxu0 0
        %596 = vmatpush.bf16.xpose.msra.mxu0 0
        %597 = vmatpush.bf16.xpose.msra.mxu0 0
        %598 = vmatpush.bf16.xpose.msra.mxu0 0
        %599 = vmatpush.bf16.xpose.msra.mxu0 0
        %600 = vmatpush.bf16.xpose.msra.mxu0 %v591
        %601 = vmatmul.bf16.gmra.mxu0 %v588
        %v602 = vpop.f32.mrf.mxu0
        %v603 = vadd.f32 0.0, %v602
        %v604 = vpop.f32.mrf.mxu0
        %605 = vdwg.mxu0
        %v606 = vsel %vm457, %v603, -inf
        %607 = vmax.xlane.f32.xlu0 %v606
        %v608 = vpop.xlane.xlu0 %607
        %v609 = vsub.f32 %v603, %v608
        %v610 = vmul.f32 %v609, 1.442695
        %v611 = vpow.pop %v610
        %v612 = vsel %vm457, %v611, 0.0
        %613 = vadd.xlane.f32.xlu0 %v612
        %v614 = vpop.xlane.xlu0 %613
        %v615 = vrcp.pop %v614
        %v616 = vmul.f32 %v614, %v615
        %v617 = vsub.f32 1.0, %v616
        %v618 = vmul.f32 %v615, %v617
        %v619 = vadd.f32 %v615, %v618
        %vm620 = vweird.f32 %v614
        %vm621 = vweird.f32 %v615
        %vm622 = vmor %vm620, %vm621
        %v623 = vsel %vm622, %v615, %v619
        %v624 = vand.u32 2147483647, %v614
        %vm625 = vcmp.eq.f32.partialorder %v624, 8.507059e+37
        %v626 = vand.u32 %v614, 2147483648
        %v627 = vor.u32 1.1754944e-38, %v626
        %v628 = vsel %vm625, %v627, %v623
        %v629 = vmul.f32 1.0, %v628
        %v630 = vmul.f32 %v611, %v629
        %v631 = vpack.c.bf16 %v630, %v630
        %s632 = scalar_lea.vmem %s386, 8
        %633 = vst.msk [vmem:[%s632] sm:$0xf] %vm484, %v631
        %634 = vrot.lane.b32.xlu0 %v490, 112
        %v635 = vpop.permute.xlu0 %634
        %v638 = vsel %vm457, %v631, 0
        %640 = vmatpush.bf16.msra.mxu0 0
        %641 = vmatpush.bf16.msra.mxu0 0
        %642 = vmatpush.bf16.msra.mxu0 0
        %643 = vmatpush.bf16.msra.mxu0 0
        %644 = vmatpush.bf16.msra.mxu0 0
        %645 = vmatpush.bf16.msra.mxu0 0
        %646 = vmatpush.bf16.msra.mxu0 0
        %647 = vmatpush.bf16.msra.mxu0 %v635
        %648 = vmatmul.bf16.gmra.mxu0 %v638
        %v649 = vpop.f32.mrf.mxu0
        %v650 = vadd.f32 0.0, %v649
        %v651 = vpop.f32.mrf.mxu0
        %652 = vdwg.mxu0
        %v653 = vpack.c.bf16 %v650, %v650
        %654 = vrot.lane.b32.xlu0 %v511, 104
        %v655 = vpop.permute.xlu0 %654
        %656 = vrot.lane.b32.xlu0 %v436, 104
        %v657 = vpop.permute.xlu0 %656
        %v659 = vsel %vm437, %v655, 0
        %v662 = vsel %vm437, %v657, 0
        %664 = vmatpush.bf16.xpose.msra.mxu0 0
        %665 = vmatpush.bf16.xpose.msra.mxu0 0
        %666 = vmatpush.bf16.xpose.msra.mxu0 0
        %667 = vmatpush.bf16.xpose.msra.mxu0 0
        %668 = vmatpush.bf16.xpose.msra.mxu0 0
        %669 = vmatpush.bf16.xpose.msra.mxu0 0
        %670 = vmatpush.bf16.xpose.msra.mxu0 0
        %671 = vmatpush.bf16.xpose.msra.mxu0 %v662
        %672 = vmatmul.bf16.gmra.mxu0 %v659
        %v673 = vpop.f32.mrf.mxu0
        %v674 = vadd.f32 0.0, %v673
        %v675 = vpop.f32.mrf.mxu0
        %676 = vdwg.mxu0
        %v677 = vsel %vm457, %v674, -inf
        %678 = vmax.xlane.f32.xlu0 %v677
        %v679 = vpop.xlane.xlu0 %678
        %v680 = vsub.f32 %v674, %v679
        %v681 = vmul.f32 %v680, 1.442695
        %v682 = vpow.pop %v681
        %v683 = vsel %vm457, %v682, 0.0
        %684 = vadd.xlane.f32.xlu0 %v683
        %v685 = vpop.xlane.xlu0 %684
        %v686 = vrcp.pop %v685
        %v687 = vmul.f32 %v685, %v686
        %v688 = vsub.f32 1.0, %v687
        %v689 = vmul.f32 %v686, %v688
        %v690 = vadd.f32 %v686, %v689
        %vm691 = vweird.f32 %v685
        %vm692 = vweird.f32 %v686
        %vm693 = vmor %vm691, %vm692
        %v694 = vsel %vm693, %v686, %v690
        %v695 = vand.u32 2147483647, %v685
        %vm696 = vcmp.eq.f32.partialorder %v695, 8.507059e+37
        %v697 = vand.u32 %v685, 2147483648
        %v698 = vor.u32 1.1754944e-38, %v697
        %v699 = vsel %vm696, %v698, %v694
        %v700 = vmul.f32 1.0, %v699
        %v701 = vmul.f32 %v682, %v700
        %v702 = vpack.c.bf16 %v701, %v701
        %s703 = scalar_lea.vmem %s386, 12
        %704 = vst.msk [vmem:[%s703] sm:$0xf] %vm484, %v702
        %705 = vrot.lane.b32.xlu0 %v490, 104
        %v706 = vpop.permute.xlu0 %705
        %v709 = vsel %vm457, %v702, 0
        %711 = vmatpush.bf16.msra.mxu0 0
        %712 = vmatpush.bf16.msra.mxu0 0
        %713 = vmatpush.bf16.msra.mxu0 0
        %714 = vmatpush.bf16.msra.mxu0 0
        %715 = vmatpush.bf16.msra.mxu0 0
        %716 = vmatpush.bf16.msra.mxu0 0
        %717 = vmatpush.bf16.msra.mxu0 0
        %718 = vmatpush.bf16.msra.mxu0 %v706
        %719 = vmatmul.bf16.gmra.mxu0 %v709
        %v720 = vpop.f32.mrf.mxu0
        %v721 = vadd.f32 0.0, %v720
        %v722 = vpop.f32.mrf.mxu0
        %723 = vdwg.mxu0
        %v724 = vpack.c.bf16 %v721, %v721
        %v726 = vunpack.c.l.b16 %v582
        %v727 = vpack.c.b16 %v726, %v726
        %728 = vrot.lane.b32.xlu0 %v727, 8
        %v729 = vpop.permute.xlu0 %728
        %v731 = vunpack.c.l.b16 %v653
        %v732 = vpack.c.b16 %v731, %v731
        %733 = vrot.lane.b32.xlu0 %v732, 16
        %v734 = vpop.permute.xlu0 %733
        %v736 = vunpack.c.l.b16 %v724
        %v737 = vpack.c.b16 %v736, %v736
        %738 = vrot.lane.b32.xlu0 %v737, 24
        %v739 = vpop.permute.xlu0 %738
        %v742 = vsel %vm437, %v508, %v729
        %v744 = vsel %vm457, %v742, %v734
        %vm745 = vcmask 195584
        %v747 = vsel %vm745, %v744, %v739
        %v748 = vld [vmem:[%s5] sm:$0xf]
        %v749 = vld [vmem:[%s5 + $0x4] sm:$0xf]
        %v750 = vld [vmem:[%s5 + $0x8] sm:$0xf]
        %v751 = vld [vmem:[%s5 + $0xc] sm:$0xf]
        %v752 = vld [vmem:[%s6] sm:$0x1]
        %v754 = vperm.slane %v752, 0
        %v760 = vunpack.c.l.b16 %v748
        %v761 = vunpack.c.l.b16 %v749
        %v762 = vunpack.c.l.b16 %v750
        %v763 = vunpack.c.l.b16 %v751
        %v764 = vpack.c.b16 %v761, %v760
        %v765 = vpack.c.b16 %v763, %v762
        %v768 = vsel %vm409, %v747, 0
        %770 = vmatpush.bf16.msra.mxu0 0
        %771 = vmatpush.bf16.msra.mxu0 0
        %772 = vmatpush.bf16.msra.mxu0 0
        %773 = vmatpush.bf16.msra.mxu0 0
        %774 = vmatpush.bf16.msra.mxu0 0
        %775 = vmatpush.bf16.msra.mxu0 0
        %776 = vmatpush.bf16.msra.mxu0 %v765
        %777 = vmatpush.bf16.msra.mxu0 %v764
        %778 = vmatmul.bf16.gmra.mxu0 %v768
        %v779 = vpop.f32.mrf.mxu0
        %v780 = vadd.f32 %v754, %v779
        %v781 = vpop.f32.mrf.mxu0
        %782 = vdwg.mxu0
        %783 = vst.msk [vmem:[%s351] sm:$0xff] %vm409, %v780
        %s784 = sand.u32 %s209, 1
        %s785 = scalar_lea.sflag [#allocation3], %s784
        %s786 = sand.u32 %s209, 1
        %s787 = smul.addr %s786, 8
        %s788 = scalar_lea.vmem [#allocation2], %s787
        %p789 = scmp.lt.s32.totalorder %s27, 1
        %s790 = scalar_select %p789, %s27, 1
        %p791 = scmp.lt.s32.totalorder %s28, 0
        %s792 = scalar_select %p791, %s28, 0
        %s793 = smul.addr %s790, 4
        %s794 = sadd.s32 %s792, %s793
        %s795 = smul.addr %s794, 4
        %s796 = scalar_lea.vmem %s8, %s795
        // Predicated region
        $region49: #{multi_head_attention.1} parent=47 // pred_check
          %p797 = pneg %p219
        $region50: #{multi_head_attention.1} parent=47 // pred_check_branch
          %799 = sbr.rel (%p797) target = $region52
        $region51: #{multi_head_attention.1} parent=47 // pred_region
          %801 = vsyncadd %s785, 0
          %s802 = sadd.s32 %s28, %s27
          %s803 = smul.addr %s802, 8
          %s804 = scalar_lea.hbm %s7, %s803
          %s806 = sshll.u32 %s788, 4
          %s807 = int_to_ptr.vmem [resolvable:$true] %s806
          %s808 = sshll.u32 %s804, 4
          %s809 = int_to_ptr.hbm [resolvable:$true] %s808
          %811 = dma.vmem_to_hbm [thread:$0]  %s807, 128, %s809, %s785
        $region52: #{multi_head_attention.1} parent=47 // pred_fallthru
          _
        // Predicated region
        $region53: #{multi_head_attention.1} parent=47 // pred_check
          %p812 = pneg %p247
        $region54: #{multi_head_attention.1} parent=47 // pred_check_branch
          %814 = sbr.rel (%p812) target = $region56
        $region55: #{multi_head_attention.1} parent=47 // pred_region
          _
        $region56: #{multi_head_attention.1} parent=47 // pred_fallthru
          _
      $region48: #{multi_head_attention.1} parent=5 // pred_fallthru
        _
      %p815 = scmp.le.s32.totalorder 2, %s18
      // Predicated region
      $region57: #{multi_head_attention.1} parent=5 // pred_check
        %p816 = pneg %p815
      $region58: #{multi_head_attention.1} parent=5 // pred_check_branch
        %818 = sbr.rel (%p816) target = $region60
      $region59: #{multi_head_attention.1} parent=5 // pred_region
        %s819 = ssub.s32 %s18, 2
        // Predicated region
        $region61: #{multi_head_attention.1} parent=59 // pred_check
          %p820 = pneg %p225
        $region62: #{multi_head_attention.1} parent=59 // pred_check_branch
          %822 = sbr.rel (%p820) target = $region64
        $region63: #{multi_head_attention.1} parent=59 // pred_region
          %s823 = sand.u32 %s210, 1
          %s824 = scalar_lea.sflag [#allocation3], %s823
          %s825 = sand.u32 %s210, 1
          %s826 = smul.addr %s825, 8
          %s827 = scalar_lea.vmem [#allocation2], %s826
          %829 = dma.done %s824, 128
        $region64: #{multi_head_attention.1} parent=59 // pred_fallthru
          _
        // Predicated region
        $region65: #{multi_head_attention.1} parent=59 // pred_check
          %p830 = pneg %p253
        $region66: #{multi_head_attention.1} parent=59 // pred_check_branch
          %832 = sbr.rel (%p830) target = $region68
        $region67: #{multi_head_attention.1} parent=59 // pred_region
          %p833 = scmp.lt.s32.totalorder %s29, 1
          %s834 = scalar_select %p833, %s29, 1
          %p835 = scmp.lt.s32.totalorder %s30, 0
          %s836 = scalar_select %p835, %s30, 0
          %s837 = smul.addr %s834, 4
          %s838 = sadd.s32 %s836, %s837
          %s839 = smul.addr %s838, 4
          %s840 = scalar_lea.vmem %s8, %s839
        $region68: #{multi_head_attention.1} parent=59 // pred_fallthru
          _
      $region60: #{multi_head_attention.1} parent=5 // pred_fallthru
        _
    $region6: #{multi_head_attention.1} parent=1 // loop_footer
      %s22 = sadd.s32 1, %s18
    $region7: #{multi_head_attention.1} parent=1 // loop_footer_branch
      %17 = sbr.rel target = $region3
    $region8: #{multi_head_attention.1} parent=1 // loop_exit
      _
    %841 = vsyncpa [#allocation3], 1
    %s842 = scalar_lea.sflag [#allocation3], 1
    %843 = vsyncpa %s842, 1

// kernel: multi_head_attention.1
$region0: #{multi_head_attention.1}
  #allocation0 [shape = 'u32[]', space=smem, size = 0x4, offset = 0x4, fixed_abs, tag = 'smem constant byte address 0x4 - core index']
  #allocation1 [shape = 'u32[72,128]{1,0:T(1,128)}', space=vmem, size = 0x9000, scoped, tag = 'internal scratch']
  %s0 = inlined_call_operand.vmem [shape: bf16[2,8,32], index: 0, kind: input, shape index: {}]
  %s1 = inlined_call_operand.vmem [shape: bf16[2,16,32], index: 1, kind: input, shape index: {}]
  %s2 = inlined_call_operand.vmem [shape: bf16[2,16,32], index: 2, kind: input, shape index: {}]
  %s3 = inlined_call_operand.vmem [shape: bf16[32,32], index: 3, kind: input, shape index: {}]
  %s4 = inlined_call_operand.vmem [shape: f32[1,32], index: 4, kind: input, shape index: {}]
  %s5 = inlined_call_operand.vmem [shape: bf16[32,32], index: 5, kind: input, shape index: {}]
  %s6 = inlined_call_operand.vmem [shape: f32[1,32], index: 6, kind: input, shape index: {}]
  %s7 = inlined_call_operand.hbm [shape: f32[2,8,32], index: 7, kind: output, shape index: {0}]
  %s8 = inlined_call_operand.vmem [shape: bf16[2,4,8,16], index: 8, kind: output, shape index: {1}]
  %9 = xla_tuple %s7, %s8
  %s10 = sld [smem:[#allocation0]]
  $region69: #{multi_head_attention.1} parent=0
    _
  %s12 = ssub.s32 1, %s10
  %s13 = scalar_select 0, %s12, %s10
  $region1: #{multi_head_attention.1} parent=0
    #allocation2 [shape = 'u8[8192]{0}', space=vmem, size = 0x2000, scoped, tag = 'output window, operand 0']
    #allocation3 [shape = 's32[2]{0}', space=sflag, size = 0x8, scoped, tag = 'scoped memory for multi_head_attention.1']
    %14 = vsyncpa [#allocation3], 0
    %s15 = scalar_lea.sflag [#allocation3], 1
    %16 = vsyncpa %s15, 0
    loop: start=0, step=1, limit=4
    $region2: #{multi_head_attention.1} parent=1 // loop_pre_header
      _
    $region3: #{multi_head_attention.1} parent=1 // loop_header
      %s18 = sphi 0, %s22
      %p19 = scmp.ge.s32.totalorder %s18, 4
      %s25 = sphi 0, %s37
      %s26 = sphi 0, %s33
      %s27 = sphi 0, %s25
      %s28 = sphi 0, %s26
      %s29 = sphi 0, %s27
      %s30 = sphi 0, %s28
      %s42 = sphi 0, %s44
      %s45 = sphi 0, %s42
      %s46 = sphi 0, %s45
      %s62 = sphi 0, %s46
      %s68 = sphi 0, %s70
      %s71 = sphi 0, %s68
      %s72 = sphi 0, %s71
      %s88 = sphi 0, %s72
      %s94 = sphi 0, %s96
      %s97 = sphi 0, %s94
      %s98 = sphi 0, %s97
      %s114 = sphi 0, %s98
      %s118 = sphi 0, %s118
      %s120 = sphi 0, %s118
      %s121 = sphi 0, %s120
      %s135 = sphi 0, %s121
      %s139 = sphi 0, %s139
      %s141 = sphi 0, %s139
      %s142 = sphi 0, %s141
      %s156 = sphi 0, %s142
      %s160 = sphi 0, %s160
      %s162 = sphi 0, %s160
      %s163 = sphi 0, %s162
      %s177 = sphi 0, %s163
      %s181 = sphi 0, %s181
      %s183 = sphi 0, %s181
      %s184 = sphi 0, %s183
      %s198 = sphi 0, %s184
      %s206 = sphi 0, %s208
      %s209 = sphi 0, %s206
      %s210 = sphi 0, %s209
      %s226 = sphi 0, %s210
      %s234 = sphi 0, %s236
      %s237 = sphi 0, %s234
      %s238 = sphi 0, %s237
      %s254 = sphi 0, %s238
    $region4: #{multi_head_attention.1} parent=1 // loop_header_branch
      %21 = sbr.rel (%p19) target = $region8
    $region5: #{multi_head_attention.1} parent=1 // loop_body
      %s23 = ssub.s32 %s18, 1
      %s24 = ssub.s32 %s18, 2
      %s31 = sadd.s32 1, %s26
      %p32 = scmp.ge.s32.totalorder %s31, 1
      %s33 = scalar_select %p32, 0, %s31
      %s34 = sadd.s32 1, %s25
      %s35 = scalar_select %p32, %s34, %s25
      %p36 = scmp.ge.s32.totalorder %s35, 2
      %s37 = scalar_select %p36, 0, %s35
      %s38 = ssub.s32 %s25, %s37
      %s39 = ssub.s32 %s26, %s33
      %s40 = sor.u32 %s38, %s39
      %p41 = scmp.eq.s32.totalorder %s40, 0
      %s43 = sadd.s32 %s42, 1
      %s44 = scalar_select %p41, %s42, %s43
      %p47 = pneg %p41
      %p48 = scmp.eq.s32.totalorder %s18, 1
      %p49 = por %p47, %p48
      %p50 = scmp.ne.s32.totalorder %s42, %s45
      %p51 = scmp.eq.s32.totalorder %s18, 0
      %p52 = por %p50, %p51
      %p53 = scmp.ne.s32.totalorder %s42, %s45
      %p54 = scmp.eq.s32.totalorder %s23, 1
      %p55 = por %p53, %p54
      %p56 = scmp.ne.s32.totalorder %s45, %s46
      %p57 = scmp.eq.s32.totalorder %s23, 0
      %p58 = por %p56, %p57
      %p59 = scmp.ne.s32.totalorder %s45, %s46
      %p60 = scmp.eq.s32.totalorder %s24, 1
      %p61 = por %p59, %p60
      %p63 = scmp.ne.s32.totalorder %s46, %s62
      %p64 = scmp.eq.s32.totalorder %s24, 0
      %p65 = por %p63, %p64
      %s66 = ssub.s32 %s25, %s37
      %p67 = scmp.eq.s32.totalorder %s66, 0
      %s69 = sadd.s32 %s68, 1
      %s70 = scalar_select %p67, %s68, %s69
      %p73 = pneg %p67
      %p74 = scmp.eq.s32.totalorder %s18, 1
      %p75 = por %p73, %p74
      %p76 = scmp.ne.s32.totalorder %s68, %s71
      %p77 = scmp.eq.s32.totalorder %s18, 0
      %p78 = por %p76, %p77
      %p79 = scmp.ne.s32.totalorder %s68, %s71
      %p80 = scmp.eq.s32.totalorder %s23, 1
      %p81 = por %p79, %p80
      %p82 = scmp.ne.s32.totalorder %s71, %s72
      %p83 = scmp.eq.s32.totalorder %s23, 0
      %p84 = por %p82, %p83
      %p85 = scmp.ne.s32.totalorder %s71, %s72
      %p86 = scmp.eq.s32.totalorder %s24, 1
      %p87 = por %p85, %p86
      %p89 = scmp.ne.s32.totalorder %s72, %s88
      %p90 = scmp.eq.s32.totalorder %s24, 0
      %p91 = por %p89, %p90
      %s92 = ssub.s32 %s25, %s37
      %p93 = scmp.eq.s32.totalorder %s92, 0
      %s95 = sadd.s32 %s94, 1
      %s96 = scalar_select %p93, %s94, %s95
      %p99 = pneg %p93
      %p100 = scmp.eq.s32.totalorder %s18, 1
      %p101 = por %p99, %p100
      %p102 = scmp.ne.s32.totalorder %s94, %s97
      %p103 = scmp.eq.s32.totalorder %s18, 0
      %p104 = por %p102, %p103
      %p105 = scmp.ne.s32.totalorder %s94, %s97
      %p106 = scmp.eq.s32.totalorder %s23, 1
      %p107 = por %p105, %p106
      %p108 = scmp.ne.s32.totalorder %s97, %s98
      %p109 = scmp.eq.s32.totalorder %s23, 0
      %p110 = por %p108, %p109
      %p111 = scmp.ne.s32.totalorder %s97, %s98
      %p112 = scmp.eq.s32.totalorder %s24, 1
      %p113 = por %p111, %p112
      %p115 = scmp.ne.s32.totalorder %s98, %s114
      %p116 = scmp.eq.s32.totalorder %s24, 0
      %p117 = por %p115, %p116
      %s119 = sadd.s32 %s118, 1
      %p122 = scmp.eq.s32.totalorder %s18, 1
      %p123 = scmp.ne.s32.totalorder %s118, %s120
      %p124 = scmp.eq.s32.totalorder %s18, 0
      %p125 = por %p123, %p124
      %p126 = scmp.ne.s32.totalorder %s118, %s120
      %p127 = scmp.eq.s32.totalorder %s23, 1
      %p128 = por %p126, %p127
      %p129 = scmp.ne.s32.totalorder %s120, %s121
      %p130 = scmp.eq.s32.totalorder %s23, 0
      %p131 = por %p129, %p130
      %p132 = scmp.ne.s32.totalorder %s120, %s121
      %p133 = scmp.eq.s32.totalorder %s24, 1
      %p134 = por %p132, %p133
      %p136 = scmp.ne.s32.totalorder %s121, %s135
      %p137 = scmp.eq.s32.totalorder %s24, 0
      %p138 = por %p136, %p137
      %s140 = sadd.s32 %s139, 1
      %p143 = scmp.eq.s32.totalorder %s18, 1
      %p144 = scmp.ne.s32.totalorder %s139, %s141
      %p145 = scmp.eq.s32.totalorder %s18, 0
      %p146 = por %p144, %p145
      %p147 = scmp.ne.s32.totalorder %s139, %s141
      %p148 = scmp.eq.s32.totalorder %s23, 1
      %p149 = por %p147, %p148
      %p150 = scmp.ne.s32.totalorder %s141, %s142
      %p151 = scmp.eq.s32.totalorder %s23, 0
      %p152 = por %p150, %p151
      %p153 = scmp.ne.s32.totalorder %s141, %s142
      %p154 = scmp.eq.s32.totalorder %s24, 1
      %p155 = por %p153, %p154
      %p157 = scmp.ne.s32.totalorder %s142, %s156
      %p158 = scmp.eq.s32.totalorder %s24, 0
      %p159 = por %p157, %p158
      %s161 = sadd.s32 %s160, 1
      %p164 = scmp.eq.s32.totalorder %s18, 1
      %p165 = scmp.ne.s32.totalorder %s160, %s162
      %p166 = scmp.eq.s32.totalorder %s18, 0
      %p167 = por %p165, %p166
      %p168 = scmp.ne.s32.totalorder %s160, %s162
      %p169 = scmp.eq.s32.totalorder %s23, 1
      %p170 = por %p168, %p169
      %p171 = scmp.ne.s32.totalorder %s162, %s163
      %p172 = scmp.eq.s32.totalorder %s23, 0
      %p173 = por %p171, %p172
      %p174 = scmp.ne.s32.totalorder %s162, %s163
      %p175 = scmp.eq.s32.totalorder %s24, 1
      %p176 = por %p174, %p175
      %p178 = scmp.ne.s32.totalorder %s163, %s177
      %p179 = scmp.eq.s32.totalorder %s24, 0
      %p180 = por %p178, %p179
      %s182 = sadd.s32 %s181, 1
      %p185 = scmp.eq.s32.totalorder %s18, 1
      %p186 = scmp.ne.s32.totalorder %s181, %s183
      %p187 = scmp.eq.s32.totalorder %s18, 0
      %p188 = por %p186, %p187
      %p189 = scmp.ne.s32.totalorder %s181, %s183
      %p190 = scmp.eq.s32.totalorder %s23, 1
      %p191 = por %p189, %p190
      %p192 = scmp.ne.s32.totalorder %s183, %s184
      %p193 = scmp.eq.s32.totalorder %s23, 0
      %p194 = por %p192, %p193
      %p195 = scmp.ne.s32.totalorder %s183, %s184
      %p196 = scmp.eq.s32.totalorder %s24, 1
      %p197 = por %p195, %p196
      %p199 = scmp.ne.s32.totalorder %s184, %s198
      %p200 = scmp.eq.s32.totalorder %s24, 0
      %p201 = por %p199, %p200
      %s202 = ssub.s32 %s25, %s37
      %s203 = ssub.s32 %s26, %s33
      %s204 = sor.u32 %s202, %s203
      %p205 = scmp.eq.s32.totalorder %s204, 0
      %s207 = sadd.s32 %s206, 1
      %s208 = scalar_select %p205, %s206, %s207
      %p211 = pneg %p205
      %p212 = scmp.eq.s32.totalorder %s18, 1
      %p213 = por %p211, %p212
      %p214 = scmp.ne.s32.totalorder %s206, %s209
      %p215 = scmp.eq.s32.totalorder %s18, 0
      %p216 = por %p214, %p215
      %p217 = scmp.ne.s32.totalorder %s206, %s209
      %p218 = scmp.eq.s32.totalorder %s23, 1
      %p219 = por %p217, %p218
      %p220 = scmp.ne.s32.totalorder %s209, %s210
      %p221 = scmp.eq.s32.totalorder %s23, 0
      %p222 = por %p220, %p221
      %p223 = scmp.ne.s32.totalorder %s209, %s210
      %p224 = scmp.eq.s32.totalorder %s24, 1
      %p225 = por %p223, %p224
      %p227 = scmp.ne.s32.totalorder %s210, %s226
      %p228 = scmp.eq.s32.totalorder %s24, 0
      %p229 = por %p227, %p228
      %s230 = ssub.s32 %s25, %s37
      %s231 = ssub.s32 %s26, %s33
      %s232 = sor.u32 %s230, %s231
      %p233 = scmp.eq.s32.totalorder %s232, 0
      %s235 = sadd.s32 %s234, 1
      %s236 = scalar_select %p233, %s234, %s235
      %p239 = pneg %p233
      %p240 = scmp.eq.s32.totalorder %s18, 1
      %p241 = por %p239, %p240
      %p242 = scmp.ne.s32.totalorder %s234, %s237
      %p243 = scmp.eq.s32.totalorder %s18, 0
      %p244 = por %p242, %p243
      %p245 = scmp.ne.s32.totalorder %s234, %s237
      %p246 = scmp.eq.s32.totalorder %s23, 1
      %p247 = por %p245, %p246
      %p248 = scmp.ne.s32.totalorder %s237, %s238
      %p249 = scmp.eq.s32.totalorder %s23, 0
      %p250 = por %p248, %p249
      %p251 = scmp.ne.s32.totalorder %s237, %s238
      %p252 = scmp.eq.s32.totalorder %s24, 1
      %p253 = por %p251, %p252
      %p255 = scmp.ne.s32.totalorder %s238, %s254
      %p256 = scmp.eq.s32.totalorder %s24, 0
      %p257 = por %p255, %p256
      %p258 = scmp.le.s32.totalorder 1, %s18
      %p259 = scmp.lt.s32.totalorder %s18, 3
      %p260 = pnand %p258, %p259
      %p261 = pneg %p260
      // Predicated region
      $region9: #{multi_head_attention.1} parent=5 // pred_check
        _
      $region10: #{multi_head_attention.1} parent=5 // pred_check_branch
        %263 = sbr.rel (%p260) target = $region12
      $region11: #{multi_head_attention.1} parent=5 // pred_region
        %s264 = ssub.s32 %s18, 1
        // Predicated region
        $region13: #{multi_head_attention.1} parent=11 // pred_check
          %p265 = pneg %p131
        $region14: #{multi_head_attention.1} parent=11 // pred_check_branch
          %267 = sbr.rel (%p265) target = $region16
        $region15: #{multi_head_attention.1} parent=11 // pred_region
          _
        $region16: #{multi_head_attention.1} parent=11 // pred_fallthru
          _
        // Predicated region
        $region17: #{multi_head_attention.1} parent=11 // pred_check
          %p268 = pneg %p152
        $region18: #{multi_head_attention.1} parent=11 // pred_check_branch
          %270 = sbr.rel (%p268) target = $region20
        $region19: #{multi_head_attention.1} parent=11 // pred_region
          _
        $region20: #{multi_head_attention.1} parent=11 // pred_fallthru
          _
        // Predicated region
        $region21: #{multi_head_attention.1} parent=11 // pred_check
          %p271 = pneg %p173
        $region22: #{multi_head_attention.1} parent=11 // pred_check_branch
          %273 = sbr.rel (%p271) target = $region24
        $region23: #{multi_head_attention.1} parent=11 // pred_region
          _
        $region24: #{multi_head_attention.1} parent=11 // pred_fallthru
          _
        // Predicated region
        $region25: #{multi_head_attention.1} parent=11 // pred_check
          %p274 = pneg %p194
        $region26: #{multi_head_attention.1} parent=11 // pred_check_branch
          %276 = sbr.rel (%p274) target = $region28
        $region27: #{multi_head_attention.1} parent=11 // pred_region
          _
        $region28: #{multi_head_attention.1} parent=11 // pred_fallthru
          _
      $region12: #{multi_head_attention.1} parent=5 // pred_fallthru
        _
      %p277 = scmp.lt.s32.totalorder %s18, 2
      // Predicated region
      $region29: #{multi_head_attention.1} parent=5 // pred_check
        %p278 = pneg %p277
      $region30: #{multi_head_attention.1} parent=5 // pred_check_branch
        %280 = sbr.rel (%p278) target = $region32
      $region31: #{multi_head_attention.1} parent=5 // pred_region
        // Predicated region
        $region33: #{multi_head_attention.1} parent=31 // pred_check
          %p281 = pneg %p52
        $region34: #{multi_head_attention.1} parent=31 // pred_check_branch
          %283 = sbr.rel (%p281) target = $region36
        $region35: #{multi_head_attention.1} parent=31 // pred_region
          %p284 = scmp.lt.s32.totalorder %s25, 1
          %s285 = scalar_select %p284, %s25, 1
          %p286 = scmp.lt.s32.totalorder %s26, 0
          %s287 = scalar_select %p286, %s26, 0
          %s288 = sadd.s32 %s287, %s285
          %s289 = smul.addr %s288, 4
          %s290 = scalar_lea.vmem %s0, %s289
        $region36: #{multi_head_attention.1} parent=31 // pred_fallthru
          _
        // Predicated region
        $region37: #{multi_head_attention.1} parent=31 // pred_check
          %p291 = pneg %p78
        $region38: #{multi_head_attention.1} parent=31 // pred_check_branch
          %293 = sbr.rel (%p291) target = $region40
        $region39: #{multi_head_attention.1} parent=31 // pred_region
          %p294 = scmp.lt.s32.totalorder %s25, 1
          %s295 = scalar_select %p294, %s25, 1
          %s296 = smul.addr %s295, 2
          %s297 = smul.addr %s296, 4
          %s298 = scalar_lea.vmem %s1, %s297
        $region40: #{multi_head_attention.1} parent=31 // pred_fallthru
          _
        // Predicated region
        $region41: #{multi_head_attention.1} parent=31 // pred_check
          %p299 = pneg %p104
        $region42: #{multi_head_attention.1} parent=31 // pred_check_branch
          %301 = sbr.rel (%p299) target = $region44
        $region43: #{multi_head_attention.1} parent=31 // pred_region
          %p302 = scmp.lt.s32.totalorder %s25, 1
          %s303 = scalar_select %p302, %s25, 1
          %s304 = smul.addr %s303, 2
          %s305 = smul.addr %s304, 4
          %s306 = scalar_lea.vmem %s2, %s305
        $region44: #{multi_head_attention.1} parent=31 // pred_fallthru
          _
      $region32: #{multi_head_attention.1} parent=5 // pred_fallthru
        _
      %p307 = scmp.le.s32.totalorder 1, %s18
      %p308 = scmp.lt.s32.totalorder %s18, 3
      %p309 = pnand %p307, %p308
      %p310 = pneg %p309
      // Predicated region
      $region45: #{multi_head_attention.1} parent=5 // pred_check
        _
      $region46: #{multi_head_attention.1} parent=5 // pred_check_branch
        %312 = sbr.rel (%p309) target = $region48
      $region47: #{multi_head_attention.1} parent=5 // pred_region
        %s313 = ssub.s32 %s18, 1
        %p314 = scmp.lt.s32.totalorder %s27, 1
        %s315 = scalar_select %p314, %s27, 1
        %p316 = scmp.lt.s32.totalorder %s28, 0
        %s317 = scalar_select %p316, %s28, 0
        %s318 = sadd.s32 %s317, %s315
        %s319 = smul.addr %s318, 4
        %s320 = scalar_lea.vmem %s0, %s319
        %p321 = pneg %p58
        %p322 = pneg %p55
        %p323 = scmp.lt.s32.totalorder %s27, 1
        %s324 = scalar_select %p323, %s27, 1
        %s325 = smul.addr %s324, 2
        %s326 = smul.addr %s325, 4
        %s327 = scalar_lea.vmem %s1, %s326
        %p328 = pneg %p84
        %p329 = pneg %p81
        %p330 = scmp.lt.s32.totalorder %s27, 1
        %s331 = scalar_select %p330, %s27, 1
        %s332 = smul.addr %s331, 2
        %s333 = smul.addr %s332, 4
        %s334 = scalar_lea.vmem %s2, %s333
        %p335 = pneg %p110
        %p336 = pneg %p107
        %p337 = pneg %p131
        %p338 = pneg %p128
        %p339 = pneg %p152
        %p340 = pneg %p149
        %p341 = pneg %p173
        %p342 = pneg %p170
        %p343 = pneg %p194
        %p344 = pneg %p191
        %p345 = pneg %p222
        %p346 = pneg %p219
        %s347 = sand.u32 %s209, 1
        %s348 = scalar_lea.sflag [#allocation3], %s347
        %s349 = sand.u32 %s209, 1
        %s350 = smul.addr %s349, 8
        %s351 = scalar_lea.vmem [#allocation2], %s350
        %p352 = pneg %p250
        %p353 = pneg %p247
        %p354 = scmp.lt.s32.totalorder %s27, 1
        %s355 = scalar_select %p354, %s27, 1
        %p356 = scmp.lt.s32.totalorder %s28, 0
        %s357 = scalar_select %p356, %s28, 0
        %s358 = smul.addr %s355, 4
        %s359 = sadd.s32 %s357, %s358
        %s360 = smul.addr %s359, 4
        %s361 = scalar_lea.vmem %s8, %s360
        %p362 = scmp.lt.s32.totalorder %s27, 1
        %s363 = scalar_select %p362, %s27, 1
        %p364 = scmp.lt.s32.totalorder %s28, 0
        %s365 = scalar_select %p364, %s28, 0
        %s366 = sadd.s32 %s365, %s363
        %s367 = smul.addr %s366, 4
        %s368 = scalar_lea.vmem %s0, %s367
        %p369 = scmp.lt.s32.totalorder %s27, 1
        %s370 = scalar_select %p369, %s27, 1
        %s371 = smul.addr %s370, 2
        %s372 = smul.addr %s371, 4
        %s373 = scalar_lea.vmem %s1, %s372
        %p374 = scmp.lt.s32.totalorder %s27, 1
        %s375 = scalar_select %p374, %s27, 1
        %s376 = smul.addr %s375, 2
        %s377 = smul.addr %s376, 4
        %s378 = scalar_lea.vmem %s2, %s377
        %p379 = scmp.lt.s32.totalorder %s27, 1
        %s380 = scalar_select %p379, %s27, 1
        %p381 = scmp.lt.s32.totalorder %s28, 0
        %s382 = scalar_select %p381, %s28, 0
        %s383 = smul.addr %s380, 4
        %s384 = sadd.s32 %s382, %s383
        %s385 = smul.addr %s384, 4
        %s386 = scalar_lea.vmem %s8, %s385
        %v388 = vld [vmem:[%s368] sm:$0xf]
        %v389 = vld [vmem:[%s3] sm:$0xf]
        %v390 = vld [vmem:[%s3 + $0x4] sm:$0xf]
        %v391 = vld [vmem:[%s3 + $0x8] sm:$0xf]
        %v392 = vld [vmem:[%s3 + $0xc] sm:$0xf]
        %v393 = vld [vmem:[%s4] sm:$0x1]
        %v395 = vperm.slane %v393, 0
        %v401 = vunpack.c.l.b16 %v389
        %v402 = vunpack.c.l.b16 %v390
        %v403 = vunpack.c.l.b16 %v391
        %v404 = vunpack.c.l.b16 %v392
        %v405 = vpack.c.b16 %v402, %v401
        %v406 = vpack.c.b16 %v404, %v403
        %vm409 = vcmask 261120
        %v411 = vsel %vm409, %v388, 0
        %413 = vmatpush.bf16.msra.mxu0 0
        %414 = vmatpush.bf16.msra.mxu0 0
        %415 = vmatpush.bf16.msra.mxu0 0
        %416 = vmatpush.bf16.msra.mxu0 0
        %417 = vmatpush.bf16.msra.mxu0 0
        %418 = vmatpush.bf16.msra.mxu0 0
        %419 = vmatpush.bf16.msra.mxu0 %v406
        %420 = vmatpush.bf16.msra.mxu0 %v405
        %421 = vmatmul.bf16.gmra.mxu0 %v411
        %v422 = vpop.f32.mrf.mxu0
        %v423 = vadd.f32 %v395, %v422
        %v424 = vpop.f32.mrf.mxu0
        %425 = vdwg.mxu0
        %v426 = vmul.f32 %v423, 0.35355338
        %v427 = vpack.c.bf16 %v426, %v426
        %v428 = vld [vmem:[%s373] sm:$0xf]
        %v429 = vld [vmem:[%s373 + $0x4] sm:$0xf]
        %v430 = vld [vmem:[%s378] sm:$0xf]
        %v431 = vld [vmem:[%s378 + $0x4] sm:$0xf]
        %v434 = vunpack.c.l.b16 %v428
        %v435 = vunpack.c.l.b16 %v429
        %v436 = vpack.c.b16 %v435, %v434
        %vm437 = vcmask 64512
        %v439 = vsel %vm437, %v427, 0
        %v442 = vsel %vm437, %v436, 0
        %444 = vmatpush.bf16.xpose.msra.mxu0 0
        %445 = vmatpush.bf16.xpose.msra.mxu0 0
        %446 = vmatpush.bf16.xpose.msra.mxu0 0
        %447 = vmatpush.bf16.xpose.msra.mxu0 0
        %448 = vmatpush.bf16.xpose.msra.mxu0 0
        %449 = vmatpush.bf16.xpose.msra.mxu0 0
        %450 = vmatpush.bf16.xpose.msra.mxu0 0
        %451 = vmatpush.bf16.xpose.msra.mxu0 %v442
        %452 = vmatmul.bf16.gmra.mxu0 %v439
        %v453 = vpop.f32.mrf.mxu0
        %v454 = vadd.f32 0.0, %v453
        %v455 = vpop.f32.mrf.mxu0
        %456 = vdwg.mxu0
        %vm457 = vcmask 130048
        %v458 = vsel %vm457, %v454, -inf
        %459 = vmax.xlane.f32.xlu0 %v458
        %v460 = vpop.xlane.xlu0 %459
        %v461 = vsub.f32 %v454, %v460
        %v462 = vmul.f32 %v461, 1.442695
        %v463 = vpow.pop %v462
        %v464 = vsel %vm457, %v463, 0.0
        %465 = vadd.xlane.f32.xlu0 %v464
        %v466 = vpop.xlane.xlu0 %465
        %v467 = vrcp.pop %v466
        %v468 = vmul.f32 %v466, %v467
        %v469 = vsub.f32 1.0, %v468
        %v470 = vmul.f32 %v467, %v469
        %v471 = vadd.f32 %v467, %v470
        %vm472 = vweird.f32 %v466
        %vm473 = vweird.f32 %v467
        %vm474 = vmor %vm472, %vm473
        %v475 = vsel %vm474, %v467, %v471
        %v476 = vand.u32 2147483647, %v466
        %vm477 = vcmp.eq.f32.partialorder %v476, 8.507059e+37
        %v478 = vand.u32 %v466, 2147483648
        %v479 = vor.u32 1.1754944e-38, %v478
        %v480 = vsel %vm477, %v479, %v475
        %v481 = vmul.f32 1.0, %v480
        %v482 = vmul.f32 %v463, %v481
        %v483 = vpack.c.bf16 %v482, %v482
        %vm484 = vcmask 125952
        %485 = vst.msk [vmem:[%s386] sm:$0xf] %vm484, %v483
        %v488 = vunpack.c.l.b16 %v430
        %v489 = vunpack.c.l.b16 %v431
        %v490 = vpack.c.b16 %v489, %v488
        %v493 = vsel %vm457, %v483, 0
        %495 = vmatpush.bf16.msra.mxu0 0
        %496 = vmatpush.bf16.msra.mxu0 0
        %497 = vmatpush.bf16.msra.mxu0 0
        %498 = vmatpush.bf16.msra.mxu0 0
        %499 = vmatpush.bf16.msra.mxu0 0
        %500 = vmatpush.bf16.msra.mxu0 0
        %501 = vmatpush.bf16.msra.mxu0 0
        %502 = vmatpush.bf16.msra.mxu0 %v490
        %503 = vmatmul.bf16.gmra.mxu0 %v493
        %v504 = vpop.f32.mrf.mxu0
        %v505 = vadd.f32 0.0, %v504
        %v506 = vpop.f32.mrf.mxu0
        %507 = vdwg.mxu0
        %v508 = vpack.c.bf16 %v505, %v505
        %v510 = vunpack.c.l.b16 %v427
        %v511 = vpack.c.b16 %v510, %v510
        %512 = vrot.lane.b32.xlu0 %v511, 120
        %v513 = vpop.permute.xlu0 %512
        %514 = vrot.lane.b32.xlu0 %v436, 120
        %v515 = vpop.permute.xlu0 %514
        %v517 = vsel %vm437, %v513, 0
        %v520 = vsel %vm437, %v515, 0
        %522 = vmatpush.bf16.xpose.msra.mxu0 0
        %523 = vmatpush.bf16.xpose.msra.mxu0 0
        %524 = vmatpush.bf16.xpose.msra.mxu0 0
        %525 = vmatpush.bf16.xpose.msra.mxu0 0
        %526 = vmatpush.bf16.xpose.msra.mxu0 0
        %527 = vmatpush.bf16.xpose.msra.mxu0 0
        %528 = vmatpush.bf16.xpose.msra.mxu0 0
        %529 = vmatpush.bf16.xpose.msra.mxu0 %v520
        %530 = vmatmul.bf16.gmra.mxu0 %v517
        %v531 = vpop.f32.mrf.mxu0
        %v532 = vadd.f32 0.0, %v531
        %v533 = vpop.f32.mrf.mxu0
        %534 = vdwg.mxu0
        %v535 = vsel %vm457, %v532, -inf
        %536 = vmax.xlane.f32.xlu0 %v535
        %v537 = vpop.xlane.xlu0 %536
        %v538 = vsub.f32 %v532, %v537
        %v539 = vmul.f32 %v538, 1.442695
        %v540 = vpow.pop %v539
        %v541 = vsel %vm457, %v540, 0.0
        %542 = vadd.xlane.f32.xlu0 %v541
        %v543 = vpop.xlane.xlu0 %542
        %v544 = vrcp.pop %v543
        %v545 = vmul.f32 %v543, %v544
        %v546 = vsub.f32 1.0, %v545
        %v547 = vmul.f32 %v544, %v546
        %v548 = vadd.f32 %v544, %v547
        %vm549 = vweird.f32 %v543
        %vm550 = vweird.f32 %v544
        %vm551 = vmor %vm549, %vm550
        %v552 = vsel %vm551, %v544, %v548
        %v553 = vand.u32 2147483647, %v543
        %vm554 = vcmp.eq.f32.partialorder %v553, 8.507059e+37
        %v555 = vand.u32 %v543, 2147483648
        %v556 = vor.u32 1.1754944e-38, %v555
        %v557 = vsel %vm554, %v556, %v552
        %v558 = vmul.f32 1.0, %v557
        %v559 = vmul.f32 %v540, %v558
        %v560 = vpack.c.bf16 %v559, %v559
        %s561 = scalar_lea.vmem %s386, 4
        %562 = vst.msk [vmem:[%s561] sm:$0xf] %vm484, %v560
        %563 = vrot.lane.b32.xlu0 %v490, 120
        %v564 = vpop.permute.xlu0 %563
        %v567 = vsel %vm457, %v560, 0
        %569 = vmatpush.bf16.msra.mxu0 0
        %570 = vmatpush.bf16.msra.mxu0 0
        %571 = vmatpush.bf16.msra.mxu0 0
        %572 = vmatpush.bf16.msra.mxu0 0
        %573 = vmatpush.bf16.msra.mxu0 0
        %574 = vmatpush.bf16.msra.mxu0 0
        %575 = vmatpush.bf16.msra.mxu0 0
        %576 = vmatpush.bf16.msra.mxu0 %v564
        %577 = vmatmul.bf16.gmra.mxu0 %v567
        %v578 = vpop.f32.mrf.mxu0
        %v579 = vadd.f32 0.0, %v578
        %v580 = vpop.f32.mrf.mxu0
        %581 = vdwg.mxu0
        %v582 = vpack.c.bf16 %v579, %v579
        %583 = vrot.lane.b32.xlu0 %v511, 112
        %v584 = vpop.permute.xlu0 %583
        %585 = vrot.lane.b32.xlu0 %v436, 112
        %v586 = vpop.permute.xlu0 %585
        %v588 = vsel %vm437, %v584, 0
        %v591 = vsel %vm437, %v586, 0
        %593 = vmatpush.bf16.xpose.msra.mxu0 0
        %594 = vmatpush.bf16.xpose.msra.mxu0 0
        %595 = vmatpush.bf16.xpose.msra.mxu0 0
        %596 = vmatpush.bf16.xpose.msra.mxu0 0
        %597 = vmatpush.bf16.xpose.msra.mxu0 0
        %598 = vmatpush.bf16.xpose.msra.mxu0 0
        %599 = vmatpush.bf16.xpose.msra.mxu0 0
        %600 = vmatpush.bf16.xpose.msra.mxu0 %v591
        %601 = vmatmul.bf16.gmra.mxu0 %v588
        %v602 = vpop.f32.mrf.mxu0
        %v603 = vadd.f32 0.0, %v602
        %v604 = vpop.f32.mrf.mxu0
        %605 = vdwg.mxu0
        %v606 = vsel %vm457, %v603, -inf
        %607 = vmax.xlane.f32.xlu0 %v606
        %v608 = vpop.xlane.xlu0 %607
        %v609 = vsub.f32 %v603, %v608
        %v610 = vmul.f32 %v609, 1.442695
        %v611 = vpow.pop %v610
        %v612 = vsel %vm457, %v611, 0.0
        %613 = vadd.xlane.f32.xlu0 %v612
        %v614 = vpop.xlane.xlu0 %613
        %v615 = vrcp.pop %v614
        %v616 = vmul.f32 %v614, %v615
        %v617 = vsub.f32 1.0, %v616
        %v618 = vmul.f32 %v615, %v617
        %v619 = vadd.f32 %v615, %v618
        %vm620 = vweird.f32 %v614
        %vm621 = vweird.f32 %v615
        %vm622 = vmor %vm620, %vm621
        %v623 = vsel %vm622, %v615, %v619
        %v624 = vand.u32 2147483647, %v614
        %vm625 = vcmp.eq.f32.partialorder %v624, 8.507059e+37
        %v626 = vand.u32 %v614, 2147483648
        %v627 = vor.u32 1.1754944e-38, %v626
        %v628 = vsel %vm625, %v627, %v623
        %v629 = vmul.f32 1.0, %v628
        %v630 = vmul.f32 %v611, %v629
        %v631 = vpack.c.bf16 %v630, %v630
        %s632 = scalar_lea.vmem %s386, 8
        %633 = vst.msk [vmem:[%s632] sm:$0xf] %vm484, %v631
        %634 = vrot.lane.b32.xlu0 %v490, 112
        %v635 = vpop.permute.xlu0 %634
        %v638 = vsel %vm457, %v631, 0
        %640 = vmatpush.bf16.msra.mxu0 0
        %641 = vmatpush.bf16.msra.mxu0 0
        %642 = vmatpush.bf16.msra.mxu0 0
        %643 = vmatpush.bf16.msra.mxu0 0
        %644 = vmatpush.bf16.msra.mxu0 0
        %645 = vmatpush.bf16.msra.mxu0 0
        %646 = vmatpush.bf16.msra.mxu0 0
        %647 = vmatpush.bf16.msra.mxu0 %v635
        %648 = vmatmul.bf16.gmra.mxu0 %v638
        %v649 = vpop.f32.mrf.mxu0
        %v650 = vadd.f32 0.0, %v649
        %v651 = vpop.f32.mrf.mxu0
        %652 = vdwg.mxu0
        %v653 = vpack.c.bf16 %v650, %v650
        %654 = vrot.lane.b32.xlu0 %v511, 104
        %v655 = vpop.permute.xlu0 %654
        %656 = vrot.lane.b32.xlu0 %v436, 104
        %v657 = vpop.permute.xlu0 %656
        %v659 = vsel %vm437, %v655, 0
        %v662 = vsel %vm437, %v657, 0
        %664 = vmatpush.bf16.xpose.msra.mxu0 0
        %665 = vmatpush.bf16.xpose.msra.mxu0 0
        %666 = vmatpush.bf16.xpose.msra.mxu0 0
        %667 = vmatpush.bf16.xpose.msra.mxu0 0
        %668 = vmatpush.bf16.xpose.msra.mxu0 0
        %669 = vmatpush.bf16.xpose.msra.mxu0 0
        %670 = vmatpush.bf16.xpose.msra.mxu0 0
        %671 = vmatpush.bf16.xpose.msra.mxu0 %v662
        %672 = vmatmul.bf16.gmra.mxu0 %v659
        %v673 = vpop.f32.mrf.mxu0
        %v674 = vadd.f32 0.0, %v673
        %v675 = vpop.f32.mrf.mxu0
        %676 = vdwg.mxu0
        %v677 = vsel %vm457, %v674, -inf
        %678 = vmax.xlane.f32.xlu0 %v677
        %v679 = vpop.xlane.xlu0 %678
        %v680 = vsub.f32 %v674, %v679
        %v681 = vmul.f32 %v680, 1.442695
        %v682 = vpow.pop %v681
        %v683 = vsel %vm457, %v682, 0.0
        %684 = vadd.xlane.f32.xlu0 %v683
        %v685 = vpop.xlane.xlu0 %684
        %v686 = vrcp.pop %v685
        %v687 = vmul.f32 %v685, %v686
        %v688 = vsub.f32 1.0, %v687
        %v689 = vmul.f32 %v686, %v688
        %v690 = vadd.f32 %v686, %v689
        %vm691 = vweird.f32 %v685
        %vm692 = vweird.f32 %v686
        %vm693 = vmor %vm691, %vm692
        %v694 = vsel %vm693, %v686, %v690
        %v695 = vand.u32 2147483647, %v685
        %vm696 = vcmp.eq.f32.partialorder %v695, 8.507059e+37
        %v697 = vand.u32 %v685, 2147483648
        %v698 = vor.u32 1.1754944e-38, %v697
        %v699 = vsel %vm696, %v698, %v694
        %v700 = vmul.f32 1.0, %v699
        %v701 = vmul.f32 %v682, %v700
        %v702 = vpack.c.bf16 %v701, %v701
        %s703 = scalar_lea.vmem %s386, 12
        %704 = vst.msk [vmem:[%s703] sm:$0xf] %vm484, %v702
        %705 = vrot.lane.b32.xlu0 %v490, 104
        %v706 = vpop.permute.xlu0 %705
        %v709 = vsel %vm457, %v702, 0
        %711 = vmatpush.bf16.msra.mxu0 0
        %712 = vmatpush.bf16.msra.mxu0 0
        %713 = vmatpush.bf16.msra.mxu0 0
        %714 = vmatpush.bf16.msra.mxu0 0
        %715 = vmatpush.bf16.msra.mxu0 0
        %716 = vmatpush.bf16.msra.mxu0 0
        %717 = vmatpush.bf16.msra.mxu0 0
        %718 = vmatpush.bf16.msra.mxu0 %v706
        %719 = vmatmul.bf16.gmra.mxu0 %v709
        %v720 = vpop.f32.mrf.mxu0
        %v721 = vadd.f32 0.0, %v720
        %v722 = vpop.f32.mrf.mxu0
        %723 = vdwg.mxu0
        %v724 = vpack.c.bf16 %v721, %v721
        %v726 = vunpack.c.l.b16 %v582
        %v727 = vpack.c.b16 %v726, %v726
        %728 = vrot.lane.b32.xlu0 %v727, 8
        %v729 = vpop.permute.xlu0 %728
        %v731 = vunpack.c.l.b16 %v653
        %v732 = vpack.c.b16 %v731, %v731
        %733 = vrot.lane.b32.xlu0 %v732, 16
        %v734 = vpop.permute.xlu0 %733
        %v736 = vunpack.c.l.b16 %v724
        %v737 = vpack.c.b16 %v736, %v736
        %738 = vrot.lane.b32.xlu0 %v737, 24
        %v739 = vpop.permute.xlu0 %738
        %v742 = vsel %vm437, %v508, %v729
        %v744 = vsel %vm457, %v742, %v734
        %vm745 = vcmask 195584
        %v747 = vsel %vm745, %v744, %v739
        %v748 = vld [vmem:[%s5] sm:$0xf]
        %v749 = vld [vmem:[%s5 + $0x4] sm:$0xf]
        %v750 = vld [vmem:[%s5 + $0x8] sm:$0xf]
        %v751 = vld [vmem:[%s5 + $0xc] sm:$0xf]
        %v752 = vld [vmem:[%s6] sm:$0x1]
        %v754 = vperm.slane %v752, 0
        %v760 = vunpack.c.l.b16 %v748
        %v761 = vunpack.c.l.b16 %v749
        %v762 = vunpack.c.l.b16 %v750
        %v763 = vunpack.c.l.b16 %v751
        %v764 = vpack.c.b16 %v761, %v760
        %v765 = vpack.c.b16 %v763, %v762
        %v768 = vsel %vm409, %v747, 0
        %770 = vmatpush.bf16.msra.mxu0 0
        %771 = vmatpush.bf16.msra.mxu0 0
        %772 = vmatpush.bf16.msra.mxu0 0
        %773 = vmatpush.bf16.msra.mxu0 0
        %774 = vmatpush.bf16.msra.mxu0 0
        %775 = vmatpush.bf16.msra.mxu0 0
        %776 = vmatpush.bf16.msra.mxu0 %v765
        %777 = vmatpush.bf16.msra.mxu0 %v764
        %778 = vmatmul.bf16.gmra.mxu0 %v768
        %v779 = vpop.f32.mrf.mxu0
        %v780 = vadd.f32 %v754, %v779
        %v781 = vpop.f32.mrf.mxu0
        %782 = vdwg.mxu0
        %783 = vst.msk [vmem:[%s351] sm:$0xff] %vm409, %v780
        %s784 = sand.u32 %s209, 1
        %s785 = scalar_lea.sflag [#allocation3], %s784
        %s786 = sand.u32 %s209, 1
        %s787 = smul.addr %s786, 8
        %s788 = scalar_lea.vmem [#allocation2], %s787
        %p789 = scmp.lt.s32.totalorder %s27, 1
        %s790 = scalar_select %p789, %s27, 1
        %p791 = scmp.lt.s32.totalorder %s28, 0
        %s792 = scalar_select %p791, %s28, 0
        %s793 = smul.addr %s790, 4
        %s794 = sadd.s32 %s792, %s793
        %s795 = smul.addr %s794, 4
        %s796 = scalar_lea.vmem %s8, %s795
        // Predicated region
        $region49: #{multi_head_attention.1} parent=47 // pred_check
          %p797 = pneg %p219
        $region50: #{multi_head_attention.1} parent=47 // pred_check_branch
          %799 = sbr.rel (%p797) target = $region52
        $region51: #{multi_head_attention.1} parent=47 // pred_region
          %801 = vsyncadd %s785, 0
          %s802 = sadd.s32 %s28, %s27
          %s803 = smul.addr %s802, 8
          %s804 = scalar_lea.hbm %s7, %s803
          %s806 = sshll.u32 %s788, 4
          %s807 = int_to_ptr.vmem [resolvable:$true] %s806
          %s808 = sshll.u32 %s804, 4
          %s809 = int_to_ptr.hbm [resolvable:$true] %s808
          %811 = dma.vmem_to_hbm [thread:$0]  %s807, 128, %s809, %s785
        $region52: #{multi_head_attention.1} parent=47 // pred_fallthru
          _
        // Predicated region
        $region53: #{multi_head_attention.1} parent=47 // pred_check
          %p812 = pneg %p247
        $region54: #{multi_head_attention.1} parent=47 // pred_check_branch
          %814 = sbr.rel (%p812) target = $region56
        $region55: #{multi_head_attention.1} parent=47 // pred_region
          _
        $region56: #{multi_head_attention.1} parent=47 // pred_fallthru
          _
      $region48: #{multi_head_attention.1} parent=5 // pred_fallthru
        _
      %p815 = scmp.le.s32.totalorder 2, %s18
      // Predicated region
      $region57: #{multi_head_attention.1} parent=5 // pred_check
        %p816 = pneg %p815
      $region58: #{multi_head_attention.1} parent=5 // pred_check_branch
        %818 = sbr.rel (%p816) target = $region60
      $region59: #{multi_head_attention.1} parent=5 // pred_region
        %s819 = ssub.s32 %s18, 2
        // Predicated region
        $region61: #{multi_head_attention.1} parent=59 // pred_check
          %p820 = pneg %p225
        $region62: #{multi_head_attention.1} parent=59 // pred_check_branch
          %822 = sbr.rel (%p820) target = $region64
        $region63: #{multi_head_attention.1} parent=59 // pred_region
          %s823 = sand.u32 %s210, 1
          %s824 = scalar_lea.sflag [#allocation3], %s823
          %s825 = sand.u32 %s210, 1
          %s826 = smul.addr %s825, 8
          %s827 = scalar_lea.vmem [#allocation2], %s826
          %829 = dma.done %s824, 128
        $region64: #{multi_head_attention.1} parent=59 // pred_fallthru
          _
        // Predicated region
        $region65: #{multi_head_attention.1} parent=59 // pred_check
          %p830 = pneg %p253
        $region66: #{multi_head_attention.1} parent=59 // pred_check_branch
          %832 = sbr.rel (%p830) target = $region68
        $region67: #{multi_head_attention.1} parent=59 // pred_region
          %p833 = scmp.lt.s32.totalorder %s29, 1
          %s834 = scalar_select %p833, %s29, 1
          %p835 = scmp.lt.s32.totalorder %s30, 0
          %s836 = scalar_select %p835, %s30, 0
          %s837 = smul.addr %s834, 4
          %s838 = sadd.s32 %s836, %s837
          %s839 = smul.addr %s838, 4
          %s840 = scalar_lea.vmem %s8, %s839
        $region68: #{multi_head_attention.1} parent=59 // pred_fallthru
          _
      $region60: #{multi_head_attention.1} parent=5 // pred_fallthru
        _
    $region6: #{multi_head_attention.1} parent=1 // loop_footer
      %s22 = sadd.s32 1, %s18
    $region7: #{multi_head_attention.1} parent=1 // loop_footer_branch
      %17 = sbr.rel target = $region3
    $region8: #{multi_head_attention.1} parent=1 // loop_exit
      _
    %841 = vsyncpa [#allocation3], 1
    %s842 = scalar_lea.sflag [#allocation3], 1
    %843 = vsyncpa %s842, 1

</llo_original>
